<compile_context>
chip_gen: v7x
topology: tpu7x:2x2x1
jax: 0.10.0
libtpu: 0.0.40
codegen_flags: <defaults>
</compile_context>

<pallas_src>
import functools

import jax
import jax.numpy as jnp
from jax import lax
from jax.experimental import pallas as pl
from jax.experimental.pallas import tpu as pltpu

LATENT_DIMS = 2          # real latent size (matches the PyTorch module)
LAT_PAD = 128            # lane-padded fused (mu | log-sigma) head width
HALF = LAT_PAD // 2      # mu in lanes [0:LATENT_DIMS), log-sigma in [HALF:HALF+LATENT_DIMS)
IN_DIM = 784
HID_DIM = 512


def _round_up(x, m):
    return (x + m - 1) // m * m


def _resident_spec(shape):
    """Grid-invariant operand: constant index_map -> fetched once, stays in VMEM."""
    return pl.BlockSpec(shape, lambda i: (0,) * len(shape))


def _vae_encoder_kernel(x_ref, w1_ref, b1_ref, w23_ref, b23_ref, eps_ref,
                        z_ref, kl_ref, *, valid_rows):
    tm = x_ref.shape[0]

    # Layer 1: bf16 x @ bf16 w1 -> f32 accumulation, + bias, ReLU, back to bf16 for MXU #2.
    h = jnp.dot(x_ref[...], w1_ref[...],
                preferred_element_type=jnp.float32) + b1_ref[...]
    h = jnp.maximum(h, 0.0).astype(jnp.bfloat16)                  # (TM, 512)

    # Fused mu / log-sigma head: ONE (512, 128) matmul (128 = MXU minimum N).
    mp = jnp.dot(h, w23_ref[...],
                 preferred_element_type=jnp.float32) + b23_ref[...]  # (TM, 128)

    # Self-inverse half-width roll brings `pre` onto lanes [0:LATENT_DIMS); slice both
    # halves to the real latent width so nothing downstream (exp, z, KL) ever touches a
    # padded lane -> no exp() overflow / NaN in dead lanes, no padded HBM traffic.
    mu = mp[:, :LATENT_DIMS]                                      # (TM, 2)
    pre = pltpu.roll(mp, HALF, 1)[:, :LATENT_DIMS]                # (TM, 2) = log(sigma)
    sigma = jnp.exp(pre)

    # Reparameterized sample -> narrow (TM, 2) store.
    z_ref[...] = (mu + sigma * eps_ref[...].astype(jnp.float32)).astype(z_ref.dtype)

    # KL = sum(sigma^2 + mu^2 - log(sigma) - 1/2) over real rows; log(sigma) == pre
    # (no exp->log round trip).  Emit a per-tile partial; the wrapper reduces tiles.
    rows = lax.broadcasted_iota(jnp.int32, (tm, LATENT_DIMS), 0) + pl.program_id(0) * tm
    kl_terms = jnp.where(rows < valid_rows,
                         sigma * sigma + mu * mu - pre - 0.5, 0.0)
    kl_ref[...] = jnp.sum(kl_terms, axis=0, keepdims=True).reshape(1, 1, LATENT_DIMS)


def variational_encoder(x, params, eps):
    """x: (B, C, H, W) or (B, 784); eps: (B, LATENT_DIMS). Returns (z (B, 2), kl scalar)."""
    B = x.shape[0]
    x2d = x.reshape(B, -1).astype(jnp.bfloat16)   # bf16 halves the dominant x DMA
    assert x2d.shape[1] == IN_DIM

    w1, b1, w23, b23 = params

    # Batch tiling.  Cap 512 keeps total VMEM < ~4 MiB (fine for v5e's 16 MiB scoped
    # default, no vmem_limit_bytes needed); TM ~= ceil(B/2) keeps G >= 2 whenever
    # possible so the "parallel" batch axis spans both v7x TensorCores.
    # NOTE: TM / B_pad / valid_rows depend on B -> one compile per distinct batch size.
    TM = min(512, _round_up(max((B + 1) // 2, 1), 8))
    B_pad = _round_up(B, TM)
    G = B_pad // TM

    if B_pad != B:
        x2d = jnp.pad(x2d, ((0, B_pad - B), (0, 0)))

    # eps stays an explicit input (bit-for-bit checkable) but NARROW (B, 2) bf16:
    # 4 B/row of DMA instead of the 512 B/row a lane-padded f32 eps would cost.
    # TODO(synk): production path — in-kernel pltpu.prng_seed + pltpu.stateful_normal.
    eps_n = eps.astype(jnp.bfloat16)
    if B_pad != B:
        eps_n = jnp.pad(eps_n, ((0, B_pad - B), (0, 0)))

    z_pad, kl_part = pl.pallas_call(
        functools.partial(_vae_encoder_kernel, valid_rows=B),
        out_shape=(
            jax.ShapeDtypeStruct((B_pad, LATENT_DIMS), jnp.float32),
            jax.ShapeDtypeStruct((G, 1, LATENT_DIMS), jnp.float32),
        ),
        grid=(G,),
        in_specs=[
            pl.BlockSpec((TM, IN_DIM), lambda i: (i, 0)),        # x tile (pipelined)
            _resident_spec((IN_DIM, HID_DIM)),                   # w1 (VMEM-resident)
            _resident_spec((1, HID_DIM)),                        # b1
            _resident_spec((HID_DIM, LAT_PAD)),                  # fused w2|w3
            _resident_spec((1, LAT_PAD)),                        # fused b2|b3
            pl.BlockSpec((TM, LATENT_DIMS), lambda i: (i, 0)),   # eps tile (narrow)
        ],
        out_specs=(
            pl.BlockSpec((TM, LATENT_DIMS), lambda i: (i, 0)),       # z (narrow, unpadded)
            pl.BlockSpec((1, 1, LATENT_DIMS), lambda i: (i, 0, 0)),  # per-tile KL partial
        ),
        compiler_params=pltpu.CompilerParams(
            dimension_semantics=("parallel",)),
    )(x2d, w1, b1, w23, b23, eps_n)

    z = z_pad[:B]
    kl = jnp.sum(kl_part)          # masked (padded) rows contributed exactly 0
    return z, kl


def init_params(key):
    """Deterministic synthetic parameters.

    Returns (kernel_params, ref_params):
      kernel_params: bf16 w1 (784,512), f32 b1 (1,512),
                     bf16 fused w23 (512,128) [mu cols @ lanes 0:2, log-sigma @ 64:66],
                     f32 fused b23 (1,128).
      ref_params:    plain f32 (w1, b1, w2, b2, w3, b3) matching nn.Linear (transposed).
    """
    k1, k2, k3, k4, k5, k6 = jax.random.split(key, 6)
    w1f = jax.random.normal(k1, (IN_DIM, HID_DIM), jnp.float32) * 0.02
    b1 = jax.random.normal(k2, (1, HID_DIM), jnp.float32) * 0.01
    w2 = jax.random.normal(k3, (HID_DIM, LATENT_DIMS), jnp.float32) * 0.02
    b2 = jax.random.normal(k4, (1, LATENT_DIMS), jnp.float32) * 0.01
    w3 = jax.random.normal(k5, (HID_DIM, LATENT_DIMS), jnp.float32) * 0.02
    b3 = jax.random.normal(k6, (1, LATENT_DIMS), jnp.float32) * 0.01

    w23 = jnp.zeros((HID_DIM, LAT_PAD), jnp.float32)
    w23 = w23.at[:, :LATENT_DIMS].set(w2).at[:, HALF:HALF + LATENT_DIMS].set(w3)
    b23 = jnp.zeros((1, LAT_PAD), jnp.float32)
    b23 = b23.at[:, :LATENT_DIMS].set(b2).at[:, HALF:HALF + LATENT_DIMS].set(b3)

    kernel_params = (w1f.astype(jnp.bfloat16), b1, w23.astype(jnp.bfloat16), b23)
    ref_params = (w1f, b1, w2, b2, w3, b3)
    return kernel_params, ref_params


def reference(x, ref_params, eps, *, match_kernel_precision=False):
    """Pure-JAX reference replicating the PyTorch forward.

    match_kernel_precision=True mirrors the kernel's bf16 weight/activation/eps storage
    with f32 accumulation, so the kernel can be checked with a tight tolerance.
    """
    B = x.shape[0]
    x2d = x.reshape(B, -1).astype(jnp.float32)
    eps = eps.astype(jnp.float32)
    w1, b1, w2, b2, w3, b3 = ref_params
    if match_kernel_precision:
        rnd = lambda a: a.astype(jnp.bfloat16).astype(jnp.float32)
        w1, w2, w3, x2d, eps = rnd(w1), rnd(w2), rnd(w3), rnd(x2d), rnd(eps)
    h = jnp.maximum(x2d @ w1 + b1, 0.0)
    if match_kernel_precision:
        h = h.astype(jnp.bfloat16).astype(jnp.float32)
    mu = h @ w2 + b2
    pre = h @ w3 + b3          # = log(sigma)
    sigma = jnp.exp(pre)
    z = mu + sigma * eps
    kl = jnp.sum(sigma ** 2 + mu ** 2 - pre - 0.5)
    return z, kl


if __name__ == "__main__":
    key = jax.random.PRNGKey(0)
    kx, kp, ke = jax.random.split(key, 3)

    B = 8
    # 28x28 single-channel "MNIST-like" input -> flattens to 784, matching nn.Linear(784, 512)
    x = jax.random.normal(kx, (B, 1, 28, 28), jnp.float32)
    kernel_params, ref_params = init_params(kp)
    # Deterministic stand-in for self.N.sample(mu.shape)
    eps = jax.random.normal(ke, (B, LATENT_DIMS), jnp.float32)

    z, kl = variational_encoder(x, kernel_params, eps)
    jax.block_until_ready((z, kl))
    assert z.shape == (B, LATENT_DIMS)
    assert bool(jnp.all(jnp.isfinite(z))) and bool(jnp.isfinite(kl))

    # Tight check against a reference that mirrors the kernel's bf16 storage precision.
    z_m, kl_m = reference(x, ref_params, eps, match_kernel_precision=True)
    assert jnp.allclose(z, z_m, atol=2e-3, rtol=2e-3), "z mismatch (precision-matched ref)"
    assert jnp.allclose(kl, kl_m, atol=2e-2, rtol=1e-3), "kl mismatch (precision-matched ref)"

    # Loose sanity check against the pure-f32 PyTorch-semantics reference
    # (slack accounts only for bf16 weight/activation/eps storage).
    z_f, kl_f = reference(x, ref_params, eps)
    assert jnp.allclose(z, z_f, atol=5e-2, rtol=5e-2), "z mismatch (f32 ref)"
    assert jnp.allclose(kl, kl_f, atol=0.5, rtol=5e-2), "kl mismatch (f32 ref)"

    print("KERNEL_OK")
</pallas_src>

<mosaic_0001>
module attributes {stable_mosaic.version = 11 : i64} {
  func.func @_vae_encoder_kernel(%arg0: i32, %arg1: memref<8x784xbf16, #tpu.memory_space<vmem>>, %arg2: memref<784x512xbf16, #tpu.memory_space<vmem>>, %arg3: memref<1x512xf32, #tpu.memory_space<vmem>>, %arg4: memref<512x128xbf16, #tpu.memory_space<vmem>>, %arg5: memref<1x128xf32, #tpu.memory_space<vmem>>, %arg6: memref<8x2xbf16, #tpu.memory_space<vmem>>, %arg7: memref<8x2xf32, #tpu.memory_space<vmem>>, %arg8: memref<1x1x2xf32, #tpu.memory_space<vmem>>) attributes {dimension_semantics = [#tpu.dimension_semantics<parallel>], iteration_bounds = array<i64: 1>, scalar_prefetch = 0 : i64, scratch_operands = 0 : i64, tpu.core_type = #tpu.core_type<tc>, window_params = [{transform_indices = @transform_0, window_bounds = array<i64: 8, 784>}, {pipeline_mode = #tpu.pipeline_mode<synchronous>, transform_indices = @transform_1, window_bounds = array<i64: 784, 512>}, {pipeline_mode = #tpu.pipeline_mode<synchronous>, transform_indices = @transform_2, window_bounds = array<i64: 1, 512>}, {pipeline_mode = #tpu.pipeline_mode<synchronous>, transform_indices = @transform_3, window_bounds = array<i64: 512, 128>}, {pipeline_mode = #tpu.pipeline_mode<synchronous>, transform_indices = @transform_4, window_bounds = array<i64: 1, 128>}, {transform_indices = @transform_5, window_bounds = array<i64: 8, 2>}, {transform_indices = @transform_6, window_bounds = array<i64: 8, 2>}, {transform_indices = @transform_7, window_bounds = array<i64: 1, 1, 2>}]} {
    %c0 = arith.constant 0 : index
    %c0_0 = arith.constant 0 : index
    %0 = vector.load %arg1[%c0, %c0_0] : memref<8x784xbf16, #tpu.memory_space<vmem>>, vector<8x784xbf16>
    %c0_1 = arith.constant 0 : index
    %c0_2 = arith.constant 0 : index
    %1 = vector.load %arg2[%c0_1, %c0_2] : memref<784x512xbf16, #tpu.memory_space<vmem>>, vector<784x512xbf16>
    %cst = arith.constant dense<0.000000e+00> : vector<8x512xf32>
    %2 = tpu.matmul %0, %1, %cst {dimension_numbers = #tpu.dot_dimension_numbers<[1], [0], [0], [1], [0, 0, 1, 1], [], []>} : vector<8x784xbf16>, vector<784x512xbf16>, vector<8x512xf32> -> vector<8x512xf32>
    %c0_3 = arith.constant 0 : index
    %c0_4 = arith.constant 0 : index
    %3 = vector.load %arg3[%c0_3, %c0_4] : memref<1x512xf32, #tpu.memory_space<vmem>>, vector<1x512xf32>
    %4 = vector.broadcast %3 : vector<1x512xf32> to vector<8x512xf32>
    %5 = arith.addf %2, %4 : vector<8x512xf32>
    %cst_5 = arith.constant 0.000000e+00 : f32
    %6 = vector.broadcast %cst_5 : f32 to vector<8x512xf32>
    %7 = arith.maximumf %5, %6 : vector<8x512xf32>
    %8 = arith.truncf %7 : vector<8x512xf32> to vector<8x512xbf16>
    %c0_6 = arith.constant 0 : index
    %c0_7 = arith.constant 0 : index
    %9 = vector.load %arg4[%c0_6, %c0_7] : memref<512x128xbf16, #tpu.memory_space<vmem>>, vector<512x128xbf16>
    %cst_8 = arith.constant dense<0.000000e+00> : vector<8x128xf32>
    %10 = tpu.matmul %8, %9, %cst_8 {dimension_numbers = #tpu.dot_dimension_numbers<[1], [0], [0], [1], [0, 0, 1, 1], [], []>} : vector<8x512xbf16>, vector<512x128xbf16>, vector<8x128xf32> -> vector<8x128xf32>
    %c0_9 = arith.constant 0 : index
    %c0_10 = arith.constant 0 : index
    %11 = vector.load %arg5[%c0_9, %c0_10] : memref<1x128xf32, #tpu.memory_space<vmem>>, vector<1x128xf32>
    %12 = vector.broadcast %11 : vector<1x128xf32> to vector<8x128xf32>
    %13 = arith.addf %10, %12 : vector<8x128xf32>
    %14 = vector.extract_strided_slice %13 {offsets = [0, 0], sizes = [8, 2], strides = [1, 1]} : vector<8x128xf32> to vector<8x2xf32>
    %c64_i32 = arith.constant 64 : i32
    %15 = tpu.dynamic_rotate %13 by %c64_i32 dim 1 : vector<8x128xf32>, i32 -> vector<8x128xf32>
    %16 = vector.extract_strided_slice %15 {offsets = [0, 0], sizes = [8, 2], strides = [1, 1]} : vector<8x128xf32> to vector<8x2xf32>
    %17 = math.exp %16 : vector<8x2xf32>
    %c0_11 = arith.constant 0 : index
    %c0_12 = arith.constant 0 : index
    %18 = vector.load %arg6[%c0_11, %c0_12] : memref<8x2xbf16, #tpu.memory_space<vmem>>, vector<8x2xbf16>
    %19 = arith.extf %18 : vector<8x2xbf16> to vector<8x2xf32>
    %20 = arith.mulf %17, %19 : vector<8x2xf32>
    %21 = arith.addf %14, %20 : vector<8x2xf32>
    %c0_13 = arith.constant 0 : index
    %c0_14 = arith.constant 0 : index
    %22 = vector.load %arg7[%c0_13, %c0_14] : memref<8x2xf32, #tpu.memory_space<vmem>>, vector<8x2xf32>
    tpu.vector_store %arg7[%c0_13, %c0_14], %21 {strides = array<i32>} : memref<8x2xf32, #tpu.memory_space<vmem>>, vector<8x2xf32>,
    %23 = tpu.iota {dimensions = array<i32: 0>} : vector<8x2xi32>
    %c8_i32 = arith.constant 8 : i32
    %24 = arith.muli %arg0, %c8_i32 : i32
    %25 = vector.broadcast %24 : i32 to vector<8x2xi32>
    %26 = arith.addi %23, %25 : vector<8x2xi32>
    %c8_i32_15 = arith.constant 8 : i32
    %27 = vector.broadcast %c8_i32_15 : i32 to vector<8x2xi32>
    %28 = arith.cmpi slt, %26, %27 : vector<8x2xi32>
    %29 = arith.mulf %17, %17 : vector<8x2xf32>
    %30 = arith.mulf %14, %14 : vector<8x2xf32>
    %31 = arith.addf %29, %30 : vector<8x2xf32>
    %32 = arith.subf %31, %16 : vector<8x2xf32>
    %cst_16 = arith.constant 5.000000e-01 : f32
    %33 = vector.broadcast %cst_16 : f32 to vector<8x2xf32>
    %34 = arith.subf %32, %33 : vector<8x2xf32>
    %cst_17 = arith.constant 0.000000e+00 : f32
    %35 = vector.broadcast %cst_17 : f32 to vector<8x2xf32>
    %36 = arith.select %28, %34, %35 : vector<8x2xi1>, vector<8x2xf32>
    %cst_18 = arith.constant dense<0.000000e+00> : vector<2xf32>
    %37 = vector.multi_reduction <add>, %36, %cst_18 [0] : vector<8x2xf32> to vector<2xf32>
    %38 = vector.shape_cast %37 : vector<2xf32> to vector<1x2xf32>
    %39 = vector.shape_cast %38 : vector<1x2xf32> to vector<1x1x2xf32>
    %c0_19 = arith.constant 0 : index
    %c0_20 = arith.constant 0 : index
    %c0_21 = arith.constant 0 : index
    %40 = vector.load %arg8[%c0_19, %c0_20, %c0_21] : memref<1x1x2xf32, #tpu.memory_space<vmem>>, vector<1x1x2xf32>
    tpu.vector_store %arg8[%c0_19, %c0_20, %c0_21], %39 {strides = array<i32>} : memref<1x1x2xf32, #tpu.memory_space<vmem>>, vector<1x1x2xf32>,
    return
  }
  func.func @transform_0(%arg0: i32) -> (i32, i32) {
    %c0_i32 = arith.constant 0 : i32
    %c0_i32_0 = arith.constant 0 : i32
    return %arg0, %c0_i32 : i32, i32
  }
  func.func @transform_1(%arg0: i32) -> (i32, i32) {
    %c0_i32 = arith.constant 0 : i32
    %c0_i32_0 = arith.constant 0 : i32
    %c0_i32_1 = arith.constant 0 : i32
    return %c0_i32, %c0_i32_0 : i32, i32
  }
  func.func @transform_2(%arg0: i32) -> (i32, i32) {
    %c0_i32 = arith.constant 0 : i32
    %c0_i32_0 = arith.constant 0 : i32
    %c0_i32_1 = arith.constant 0 : i32
    return %c0_i32, %c0_i32_0 : i32, i32
  }
  func.func @transform_3(%arg0: i32) -> (i32, i32) {
    %c0_i32 = arith.constant 0 : i32
    %c0_i32_0 = arith.constant 0 : i32
    %c0_i32_1 = arith.constant 0 : i32
    return %c0_i32, %c0_i32_0 : i32, i32
  }
  func.func @transform_4(%arg0: i32) -> (i32, i32) {
    %c0_i32 = arith.constant 0 : i32
    %c0_i32_0 = arith.constant 0 : i32
    %c0_i32_1 = arith.constant 0 : i32
    return %c0_i32, %c0_i32_0 : i32, i32
  }
  func.func @transform_5(%arg0: i32) -> (i32, i32) {
    %c0_i32 = arith.constant 0 : i32
    %c0_i32_0 = arith.constant 0 : i32
    return %arg0, %c0_i32 : i32, i32
  }
  func.func @transform_6(%arg0: i32) -> (i32, i32) {
    %c0_i32 = arith.constant 0 : i32
    %c0_i32_0 = arith.constant 0 : i32
    return %arg0, %c0_i32 : i32, i32
  }
  func.func @transform_7(%arg0: i32) -> (i32, i32, i32) {
    %c0_i32 = arith.constant 0 : i32
    %c0_i32_0 = arith.constant 0 : i32
    %c0_i32_1 = arith.constant 0 : i32
    return %arg0, %c0_i32, %c0_i32_0 : i32, i32, i32
  }
}

</mosaic_0001>

<llo_original>
// kernel: tpu_custom_call.1
$region0: #{tpu_custom_call.1}
  #allocation0 [shape = 'u32[]', space=smem, size = 0x4, offset = 0x4, fixed_abs, tag = 'smem constant byte address 0x4 - core index']
  #allocation1 [shape = 'u32[144,128]{1,0:T(1,128)}', space=vmem, size = 0x12000, scoped, tag = 'internal scratch']
  %s0 = inlined_call_operand.hbm [shape: bf16[8,784], index: 0, kind: input, shape index: {}]
  %s1 = inlined_call_operand.hbm [shape: bf16[784,512], index: 1, kind: input, shape index: {}]
  %s2 = inlined_call_operand.vmem [shape: f32[1,512], index: 2, kind: input, shape index: {}]
  %s3 = inlined_call_operand.hbm [shape: bf16[512,128], index: 3, kind: input, shape index: {}]
  %s4 = inlined_call_operand.vmem [shape: f32[1,128], index: 4, kind: input, shape index: {}]
  %s5 = inlined_call_operand.vmem [shape: bf16[8,2], index: 5, kind: input, shape index: {}]
  %s6 = inlined_call_operand.vmem [shape: f32[8,2], index: 6, kind: output, shape index: {0}]
  %s7 = inlined_call_operand.hbm [shape: f32[1,1,2], index: 7, kind: output, shape index: {1}]
  %8 = xla_tuple %s6, %s7
  %s9 = sld [smem:[#allocation0]]
  $region54: #{tpu_custom_call.1} parent=0
    _
  %s11 = ssub.s32 1, %s9
  %s12 = scalar_select 0, %s11, %s9
  $region1: #{tpu_custom_call.1} parent=0
    #allocation2 [shape = 'u8[14336]{0}', space=vmem, size = 0x3800, scoped, tag = 'input window, operand 0, single buffered']
    #allocation3 [shape = 's32[1]{0}', space=sflag, size = 0x4, scoped, tag = 'scoped memory for tpu_custom_call.1']
    #allocation4 [shape = 's32[1]{0}', space=sflag, size = 0x4, scoped, tag = 'scoped memory for tpu_custom_call.1']
    #allocation5 [shape = 'u8[802816]{0}', space=vmem, size = 0xc4000, scoped, tag = 'input window, operand 1, single buffered']
    #allocation6 [shape = 's32[1]{0}', space=sflag, size = 0x4, scoped, tag = 'scoped memory for tpu_custom_call.1']
    #allocation7 [shape = 'u8[131072]{0}', space=vmem, size = 0x20000, scoped, tag = 'input window, operand 3, single buffered']
    #allocation8 [shape = 'u8[512]{0}', space=vmem, size = 0x400, scoped, tag = 'output window, operand 1, single buffered']
    %13 = vsyncpa [#allocation3], 0
    %14 = vsyncpa [#allocation6], 0
    %15 = vsyncpa [#allocation4], 0
    // Predicated region
    $region2: #{tpu_custom_call.1} parent=1 // pred_check
      _
    $region3: #{tpu_custom_call.1} parent=1 // pred_check_branch
      %17 = sbr.rel (0) target = $region5
    $region4: #{tpu_custom_call.1} parent=1 // pred_region
      %s19 = ssub.s32 448, 448
      %20 = vsyncadd [#allocation3], %s19
      %s22 = sshll.u32 [#allocation2], 4
      %s23 = int_to_ptr.vmem [resolvable:$true] %s22
      %25 = dma.hbm_to_vmem [thread:$0]  %s0, 448, %s23, [#allocation3]
    $region5: #{tpu_custom_call.1} parent=1 // pred_fallthru
      _
    // Predicated region
    $region6: #{tpu_custom_call.1} parent=1 // pred_check
      _
    $region7: #{tpu_custom_call.1} parent=1 // pred_check_branch
      %27 = sbr.rel (0) target = $region9
    $region8: #{tpu_custom_call.1} parent=1 // pred_region
      %s29 = ssub.s32 25088, 25088
      %30 = vsyncadd [#allocation6], %s29
      %s31 = sshll.u32 [#allocation5], 4
      %s32 = int_to_ptr.vmem [resolvable:$true] %s31
      %37 = dma.hbm_to_vmem [thread:$0]  %s1, 25088, %s32, [#allocation6], 256, 256, 16
    $region9: #{tpu_custom_call.1} parent=1 // pred_fallthru
      _
    // Predicated region
    $region10: #{tpu_custom_call.1} parent=1 // pred_check
      _
    $region11: #{tpu_custom_call.1} parent=1 // pred_check_branch
      %39 = sbr.rel (0) target = $region13
    $region12: #{tpu_custom_call.1} parent=1 // pred_region
      _
    $region13: #{tpu_custom_call.1} parent=1 // pred_fallthru
      _
    // Predicated region
    $region14: #{tpu_custom_call.1} parent=1 // pred_check
      _
    $region15: #{tpu_custom_call.1} parent=1 // pred_check_branch
      %41 = sbr.rel (0) target = $region17
    $region16: #{tpu_custom_call.1} parent=1 // pred_region
      %s43 = ssub.s32 4096, 4096
      %44 = vsyncadd [#allocation6], %s43
      %s45 = sshll.u32 [#allocation7], 4
      %s46 = int_to_ptr.vmem [resolvable:$true] %s45
      %51 = dma.hbm_to_vmem [thread:$0]  %s3, 4096, %s46, [#allocation6], 64, 64, 4
    $region17: #{tpu_custom_call.1} parent=1 // pred_fallthru
      _
    // Predicated region
    $region18: #{tpu_custom_call.1} parent=1 // pred_check
      _
    $region19: #{tpu_custom_call.1} parent=1 // pred_check_branch
      %53 = sbr.rel (0) target = $region21
    $region20: #{tpu_custom_call.1} parent=1 // pred_region
      _
    $region21: #{tpu_custom_call.1} parent=1 // pred_fallthru
      _
    // Predicated region
    $region22: #{tpu_custom_call.1} parent=1 // pred_check
      _
    $region23: #{tpu_custom_call.1} parent=1 // pred_check_branch
      %55 = sbr.rel (0) target = $region25
    $region24: #{tpu_custom_call.1} parent=1 // pred_region
      _
    $region25: #{tpu_custom_call.1} parent=1 // pred_fallthru
      _
    // Predicated region
    $region26: #{tpu_custom_call.1} parent=1 // pred_check
      _
    $region27: #{tpu_custom_call.1} parent=1 // pred_check_branch
      %57 = sbr.rel (0) target = $region29
    $region28: #{tpu_custom_call.1} parent=1 // pred_region
      %58 = dma.done [#allocation3], 448
    $region29: #{tpu_custom_call.1} parent=1 // pred_fallthru
      _
    // Predicated region
    $region30: #{tpu_custom_call.1} parent=1 // pred_check
      _
    $region31: #{tpu_custom_call.1} parent=1 // pred_check_branch
      %60 = sbr.rel (0) target = $region33
    $region32: #{tpu_custom_call.1} parent=1 // pred_region
      %61 = dma.done [#allocation6], 25088
    $region33: #{tpu_custom_call.1} parent=1 // pred_fallthru
      _
    // Predicated region
    $region34: #{tpu_custom_call.1} parent=1 // pred_check
      _
    $region35: #{tpu_custom_call.1} parent=1 // pred_check_branch
      %63 = sbr.rel (0) target = $region37
    $region36: #{tpu_custom_call.1} parent=1 // pred_region
      %64 = dma.done [#allocation6], 4096
    $region37: #{tpu_custom_call.1} parent=1 // pred_fallthru
      _
    %v66 = vld [vmem:[#allocation2] sm:$0xff]
    %v67 = vld [vmem:[#allocation2 + $0x8] sm:$0xff]
    %v68 = vld [vmem:[#allocation2 + $0x10] sm:$0xff]
    %v69 = vld [vmem:[#allocation2 + $0x18] sm:$0xf]
    %v70 = vld [vmem:[#allocation5] sm:$0xff]
    %v71 = vld [vmem:[#allocation5 + $0x8] sm:$0xff]
    %v72 = vld [vmem:[#allocation5 + $0x10] sm:$0xff]
    %v73 = vld [vmem:[#allocation5 + $0x18] sm:$0xff]
    %v74 = vld [vmem:[#allocation5 + $0x20] sm:$0xff]
    %v75 = vld [vmem:[#allocation5 + $0x28] sm:$0xff]
    %v76 = vld [vmem:[#allocation5 + $0x30] sm:$0xff]
    %v77 = vld [vmem:[#allocation5 + $0x38] sm:$0xff]
    %v78 = vld [vmem:[#allocation5 + $0x40] sm:$0xff]
    %v79 = vld [vmem:[#allocation5 + $0x48] sm:$0xff]
    %v80 = vld [vmem:[#allocation5 + $0x50] sm:$0xff]
    %v81 = vld [vmem:[#allocation5 + $0x58] sm:$0xff]
    %v82 = vld [vmem:[#allocation5 + $0x60] sm:$0xff]
    %v83 = vld [vmem:[#allocation5 + $0x68] sm:$0xff]
    %v84 = vld [vmem:[#allocation5 + $0x70] sm:$0xff]
    %v85 = vld [vmem:[#allocation5 + $0x78] sm:$0xff]
    %v86 = vld [vmem:[#allocation5 + $0x80] sm:$0xff]
    %v87 = vld [vmem:[#allocation5 + $0x88] sm:$0xff]
    %v88 = vld [vmem:[#allocation5 + $0x90] sm:$0xff]
    %v89 = vld [vmem:[#allocation5 + $0x98] sm:$0xff]
    %v90 = vld [vmem:[#allocation5 + $0xa0] sm:$0xff]
    %v91 = vld [vmem:[#allocation5 + $0xa8] sm:$0xff]
    %v92 = vld [vmem:[#allocation5 + $0xb0] sm:$0xff]
    %v93 = vld [vmem:[#allocation5 + $0xb8] sm:$0xff]
    %v94 = vld [vmem:[#allocation5 + $0xc0] sm:$0xff]
    %v95 = vld [vmem:[#allocation5 + $0xc8] sm:$0xff]
    %v96 = vld [vmem:[#allocation5 + $0xd0] sm:$0xff]
    %v97 = vld [vmem:[#allocation5 + $0xd8] sm:$0xff]
    %v98 = vld [vmem:[#allocation5 + $0xe0] sm:$0xff]
    %v99 = vld [vmem:[#allocation5 + $0xe8] sm:$0xff]
    %v100 = vld [vmem:[#allocation5 + $0xf0] sm:$0xff]
    %v101 = vld [vmem:[#allocation5 + $0xf8] sm:$0xff]
    %v102 = vld [vmem:[#allocation5 + $0x100] sm:$0xff]
    %v103 = vld [vmem:[#allocation5 + $0x108] sm:$0xff]
    %v104 = vld [vmem:[#allocation5 + $0x110] sm:$0xff]
    %v105 = vld [vmem:[#allocation5 + $0x118] sm:$0xff]
    %v106 = vld [vmem:[#allocation5 + $0x120] sm:$0xff]
    %v107 = vld [vmem:[#allocation5 + $0x128] sm:$0xff]
    %v108 = vld [vmem:[#allocation5 + $0x130] sm:$0xff]
    %v109 = vld [vmem:[#allocation5 + $0x138] sm:$0xff]
    %v110 = vld [vmem:[#allocation5 + $0x140] sm:$0xff]
    %v111 = vld [vmem:[#allocation5 + $0x148] sm:$0xff]
    %v112 = vld [vmem:[#allocation5 + $0x150] sm:$0xff]
    %v113 = vld [vmem:[#allocation5 + $0x158] sm:$0xff]
    %v114 = vld [vmem:[#allocation5 + $0x160] sm:$0xff]
    %v115 = vld [vmem:[#allocation5 + $0x168] sm:$0xff]
    %v116 = vld [vmem:[#allocation5 + $0x170] sm:$0xff]
    %v117 = vld [vmem:[#allocation5 + $0x178] sm:$0xff]
    %v118 = vld [vmem:[#allocation5 + $0x180] sm:$0xff]
    %v119 = vld [vmem:[#allocation5 + $0x188] sm:$0xff]
    %v120 = vld [vmem:[#allocation5 + $0x190] sm:$0xff]
    %v121 = vld [vmem:[#allocation5 + $0x198] sm:$0xff]
    %v122 = vld [vmem:[#allocation5 + $0x1a0] sm:$0xff]
    %v123 = vld [vmem:[#allocation5 + $0x1a8] sm:$0xff]
    %v124 = vld [vmem:[#allocation5 + $0x1b0] sm:$0xff]
    %v125 = vld [vmem:[#allocation5 + $0x1b8] sm:$0xff]
    %v126 = vld [vmem:[#allocation5 + $0x1c0] sm:$0xff]
    %v127 = vld [vmem:[#allocation5 + $0x1c8] sm:$0xff]
    %v128 = vld [vmem:[#allocation5 + $0x1d0] sm:$0xff]
    %v129 = vld [vmem:[#allocation5 + $0x1d8] sm:$0xff]
    %v130 = vld [vmem:[#allocation5 + $0x1e0] sm:$0xff]
    %v131 = vld [vmem:[#allocation5 + $0x1e8] sm:$0xff]
    %v132 = vld [vmem:[#allocation5 + $0x1f0] sm:$0xff]
    %v133 = vld [vmem:[#allocation5 + $0x1f8] sm:$0xff]
    %v134 = vld [vmem:[#allocation5 + $0x200] sm:$0xff]
    %v135 = vld [vmem:[#allocation5 + $0x208] sm:$0xff]
    %v136 = vld [vmem:[#allocation5 + $0x210] sm:$0xff]
    %v137 = vld [vmem:[#allocation5 + $0x218] sm:$0xff]
    %v138 = vld [vmem:[#allocation5 + $0x220] sm:$0xff]
    %v139 = vld [vmem:[#allocation5 + $0x228] sm:$0xff]
    %v140 = vld [vmem:[#allocation5 + $0x230] sm:$0xff]
    %v141 = vld [vmem:[#allocation5 + $0x238] sm:$0xff]
    %v142 = vld [vmem:[#allocation5 + $0x240] sm:$0xff]
    %v143 = vld [vmem:[#allocation5 + $0x248] sm:$0xff]
    %v144 = vld [vmem:[#allocation5 + $0x250] sm:$0xff]
    %v145 = vld [vmem:[#allocation5 + $0x258] sm:$0xff]
    %v146 = vld [vmem:[#allocation5 + $0x260] sm:$0xff]
    %v147 = vld [vmem:[#allocation5 + $0x268] sm:$0xff]
    %v148 = vld [vmem:[#allocation5 + $0x270] sm:$0xff]
    %v149 = vld [vmem:[#allocation5 + $0x278] sm:$0xff]
    %v150 = vld [vmem:[#allocation5 + $0x280] sm:$0xff]
    %v151 = vld [vmem:[#allocation5 + $0x288] sm:$0xff]
    %v152 = vld [vmem:[#allocation5 + $0x290] sm:$0xff]
    %v153 = vld [vmem:[#allocation5 + $0x298] sm:$0xff]
    %v154 = vld [vmem:[#allocation5 + $0x2a0] sm:$0xff]
    %v155 = vld [vmem:[#allocation5 + $0x2a8] sm:$0xff]
    %v156 = vld [vmem:[#allocation5 + $0x2b0] sm:$0xff]
    %v157 = vld [vmem:[#allocation5 + $0x2b8] sm:$0xff]
    %v158 = vld [vmem:[#allocation5 + $0x2c0] sm:$0xff]
    %v159 = vld [vmem:[#allocation5 + $0x2c8] sm:$0xff]
    %v160 = vld [vmem:[#allocation5 + $0x2d0] sm:$0xff]
    %v161 = vld [vmem:[#allocation5 + $0x2d8] sm:$0xff]
    %v162 = vld [vmem:[#allocation5 + $0x2e0] sm:$0xff]
    %v163 = vld [vmem:[#allocation5 + $0x2e8] sm:$0xff]
    %v164 = vld [vmem:[#allocation5 + $0x2f0] sm:$0xff]
    %v165 = vld [vmem:[#allocation5 + $0x2f8] sm:$0xff]
    %v166 = vld [vmem:[#allocation5 + $0x300] sm:$0xff]
    %v167 = vld [vmem:[#allocation5 + $0x308] sm:$0xff]
    %v168 = vld [vmem:[#allocation5 + $0x310] sm:$0xff]
    %v169 = vld [vmem:[#allocation5 + $0x318] sm:$0xff]
    %v170 = vld [vmem:[#allocation5 + $0x320] sm:$0xff]
    %v171 = vld [vmem:[#allocation5 + $0x328] sm:$0xff]
    %v172 = vld [vmem:[#allocation5 + $0x330] sm:$0xff]
    %v173 = vld [vmem:[#allocation5 + $0x338] sm:$0xff]
    %v174 = vld [vmem:[#allocation5 + $0x340] sm:$0xff]
    %v175 = vld [vmem:[#allocation5 + $0x348] sm:$0xff]
    %v176 = vld [vmem:[#allocation5 + $0x350] sm:$0xff]
    %v177 = vld [vmem:[#allocation5 + $0x358] sm:$0xff]
    %v178 = vld [vmem:[#allocation5 + $0x360] sm:$0xff]
    %v179 = vld [vmem:[#allocation5 + $0x368] sm:$0xff]
    %v180 = vld [vmem:[#allocation5 + $0x370] sm:$0xff]
    %v181 = vld [vmem:[#allocation5 + $0x378] sm:$0xff]
    %v182 = vld [vmem:[#allocation5 + $0x380] sm:$0xff]
    %v183 = vld [vmem:[#allocation5 + $0x388] sm:$0xff]
    %v184 = vld [vmem:[#allocation5 + $0x390] sm:$0xff]
    %v185 = vld [vmem:[#allocation5 + $0x398] sm:$0xff]
    %v186 = vld [vmem:[#allocation5 + $0x3a0] sm:$0xff]
    %v187 = vld [vmem:[#allocation5 + $0x3a8] sm:$0xff]
    %v188 = vld [vmem:[#allocation5 + $0x3b0] sm:$0xff]
    %v189 = vld [vmem:[#allocation5 + $0x3b8] sm:$0xff]
    %v190 = vld [vmem:[#allocation5 + $0x3c0] sm:$0xff]
    %v191 = vld [vmem:[#allocation5 + $0x3c8] sm:$0xff]
    %v192 = vld [vmem:[#allocation5 + $0x3d0] sm:$0xff]
    %v193 = vld [vmem:[#allocation5 + $0x3d8] sm:$0xff]
    %v194 = vld [vmem:[#allocation5 + $0x3e0] sm:$0xff]
    %v195 = vld [vmem:[#allocation5 + $0x3e8] sm:$0xff]
    %v196 = vld [vmem:[#allocation5 + $0x3f0] sm:$0xff]
    %v197 = vld [vmem:[#allocation5 + $0x3f8] sm:$0xff]
    %v198 = vld [vmem:[#allocation5 + $0x400] sm:$0xff]
    %v199 = vld [vmem:[#allocation5 + $0x408] sm:$0xff]
    %v200 = vld [vmem:[#allocation5 + $0x410] sm:$0xff]
    %v201 = vld [vmem:[#allocation5 + $0x418] sm:$0xff]
    %v202 = vld [vmem:[#allocation5 + $0x420] sm:$0xff]
    %v203 = vld [vmem:[#allocation5 + $0x428] sm:$0xff]
    %v204 = vld [vmem:[#allocation5 + $0x430] sm:$0xff]
    %v205 = vld [vmem:[#allocation5 + $0x438] sm:$0xff]
    %v206 = vld [vmem:[#allocation5 + $0x440] sm:$0xff]
    %v207 = vld [vmem:[#allocation5 + $0x448] sm:$0xff]
    %v208 = vld [vmem:[#allocation5 + $0x450] sm:$0xff]
    %v209 = vld [vmem:[#allocation5 + $0x458] sm:$0xff]
    %v210 = vld [vmem:[#allocation5 + $0x460] sm:$0xff]
    %v211 = vld [vmem:[#allocation5 + $0x468] sm:$0xff]
    %v212 = vld [vmem:[#allocation5 + $0x470] sm:$0xff]
    %v213 = vld [vmem:[#allocation5 + $0x478] sm:$0xff]
    %v214 = vld [vmem:[#allocation5 + $0x480] sm:$0xff]
    %v215 = vld [vmem:[#allocation5 + $0x488] sm:$0xff]
    %v216 = vld [vmem:[#allocation5 + $0x490] sm:$0xff]
    %v217 = vld [vmem:[#allocation5 + $0x498] sm:$0xff]
    %v218 = vld [vmem:[#allocation5 + $0x4a0] sm:$0xff]
    %v219 = vld [vmem:[#allocation5 + $0x4a8] sm:$0xff]
    %v220 = vld [vmem:[#allocation5 + $0x4b0] sm:$0xff]
    %v221 = vld [vmem:[#allocation5 + $0x4b8] sm:$0xff]
    %v222 = vld [vmem:[#allocation5 + $0x4c0] sm:$0xff]
    %v223 = vld [vmem:[#allocation5 + $0x4c8] sm:$0xff]
    %v224 = vld [vmem:[#allocation5 + $0x4d0] sm:$0xff]
    %v225 = vld [vmem:[#allocation5 + $0x4d8] sm:$0xff]
    %v226 = vld [vmem:[#allocation5 + $0x4e0] sm:$0xff]
    %v227 = vld [vmem:[#allocation5 + $0x4e8] sm:$0xff]
    %v228 = vld [vmem:[#allocation5 + $0x4f0] sm:$0xff]
    %v229 = vld [vmem:[#allocation5 + $0x4f8] sm:$0xff]
    %v230 = vld [vmem:[#allocation5 + $0x500] sm:$0xff]
    %v231 = vld [vmem:[#allocation5 + $0x508] sm:$0xff]
    %v232 = vld [vmem:[#allocation5 + $0x510] sm:$0xff]
    %v233 = vld [vmem:[#allocation5 + $0x518] sm:$0xff]
    %v234 = vld [vmem:[#allocation5 + $0x520] sm:$0xff]
    %v235 = vld [vmem:[#allocation5 + $0x528] sm:$0xff]
    %v236 = vld [vmem:[#allocation5 + $0x530] sm:$0xff]
    %v237 = vld [vmem:[#allocation5 + $0x538] sm:$0xff]
    %v238 = vld [vmem:[#allocation5 + $0x540] sm:$0xff]
    %v239 = vld [vmem:[#allocation5 + $0x548] sm:$0xff]
    %v240 = vld [vmem:[#allocation5 + $0x550] sm:$0xff]
    %v241 = vld [vmem:[#allocation5 + $0x558] sm:$0xff]
    %v242 = vld [vmem:[#allocation5 + $0x560] sm:$0xff]
    %v243 = vld [vmem:[#allocation5 + $0x568] sm:$0xff]
    %v244 = vld [vmem:[#allocation5 + $0x570] sm:$0xff]
    %v245 = vld [vmem:[#allocation5 + $0x578] sm:$0xff]
    %v246 = vld [vmem:[#allocation5 + $0x580] sm:$0xff]
    %v247 = vld [vmem:[#allocation5 + $0x588] sm:$0xff]
    %v248 = vld [vmem:[#allocation5 + $0x590] sm:$0xff]
    %v249 = vld [vmem:[#allocation5 + $0x598] sm:$0xff]
    %v250 = vld [vmem:[#allocation5 + $0x5a0] sm:$0xff]
    %v251 = vld [vmem:[#allocation5 + $0x5a8] sm:$0xff]
    %v252 = vld [vmem:[#allocation5 + $0x5b0] sm:$0xff]
    %v253 = vld [vmem:[#allocation5 + $0x5b8] sm:$0xff]
    %v254 = vld [vmem:[#allocation5 + $0x5c0] sm:$0xff]
    %v255 = vld [vmem:[#allocation5 + $0x5c8] sm:$0xff]
    %v256 = vld [vmem:[#allocation5 + $0x5d0] sm:$0xff]
    %v257 = vld [vmem:[#allocation5 + $0x5d8] sm:$0xff]
    %v258 = vld [vmem:[#allocation5 + $0x5e0] sm:$0xff]
    %v259 = vld [vmem:[#allocation5 + $0x5e8] sm:$0xff]
    %v260 = vld [vmem:[#allocation5 + $0x5f0] sm:$0xff]
    %v261 = vld [vmem:[#allocation5 + $0x5f8] sm:$0xff]
    %v262 = vld [vmem:[#allocation5 + $0x600] sm:$0xff]
    %v263 = vld [vmem:[#allocation5 + $0x608] sm:$0xff]
    %v264 = vld [vmem:[#allocation5 + $0x610] sm:$0xff]
    %v265 = vld [vmem:[#allocation5 + $0x618] sm:$0xff]
    %v266 = vld [vmem:[%s2] sm:$0xf]
    %v268 = vlaneseq
    %v269 = vshrl.u32 %v268, 7
    %v270 = vsub.s32 0, %v269
    %v271 = vrot.slane %v266, %v270
    %v272 = vlaneseq
    %v273 = vshrl.u32 %v272, 7
    %v274 = vsub.s32 1, %v273
    %v275 = vrot.slane %v266, %v274
    %v276 = vlaneseq
    %v277 = vshrl.u32 %v276, 7
    %v278 = vsub.s32 2, %v277
    %v279 = vrot.slane %v266, %v278
    %v280 = vlaneseq
    %v281 = vshrl.u32 %v280, 7
    %v282 = vsub.s32 3, %v281
    %v283 = vrot.slane %v266, %v282
    %v292 = vunpack.c.l.b16 %v66
    %v293 = vunpack.c.h.b16 %v66
    %v294 = vunpack.c.l.b16 %v67
    %v295 = vunpack.c.h.b16 %v67
    %v296 = vunpack.c.l.b16 %v68
    %v297 = vunpack.c.h.b16 %v68
    %v298 = vunpack.c.l.b16 %v69
    %v299 = vpack.c.b16 %v292, %v292
    %v300 = vpack.c.b16 %v293, %v293
    %v301 = vpack.c.b16 %v294, %v294
    %v302 = vpack.c.b16 %v295, %v295
    %v303 = vpack.c.b16 %v296, %v296
    %v304 = vpack.c.b16 %v297, %v297
    %v305 = vpack.c.b16 %v298, %v298
    %v508 = vunpack.c.l.b16 %v70
    %v509 = vunpack.c.h.b16 %v70
    %v510 = vunpack.c.l.b16 %v71
    %v511 = vunpack.c.h.b16 %v71
    %v512 = vunpack.c.l.b16 %v72
    %v513 = vunpack.c.h.b16 %v72
    %v514 = vunpack.c.l.b16 %v73
    %v515 = vunpack.c.h.b16 %v73
    %v516 = vunpack.c.l.b16 %v74
    %v517 = vunpack.c.h.b16 %v74
    %v518 = vunpack.c.l.b16 %v75
    %v519 = vunpack.c.h.b16 %v75
    %v520 = vunpack.c.l.b16 %v76
    %v521 = vunpack.c.h.b16 %v76
    %v522 = vunpack.c.l.b16 %v77
    %v523 = vunpack.c.h.b16 %v77
    %v524 = vunpack.c.l.b16 %v78
    %v525 = vunpack.c.h.b16 %v78
    %v526 = vunpack.c.l.b16 %v79
    %v527 = vunpack.c.h.b16 %v79
    %v528 = vunpack.c.l.b16 %v80
    %v529 = vunpack.c.h.b16 %v80
    %v530 = vunpack.c.l.b16 %v81
    %v531 = vunpack.c.h.b16 %v81
    %v532 = vunpack.c.l.b16 %v82
    %v533 = vunpack.c.h.b16 %v82
    %v534 = vunpack.c.l.b16 %v83
    %v535 = vunpack.c.h.b16 %v83
    %v536 = vunpack.c.l.b16 %v84
    %v537 = vunpack.c.h.b16 %v84
    %v538 = vunpack.c.l.b16 %v85
    %v539 = vunpack.c.h.b16 %v85
    %v540 = vunpack.c.l.b16 %v86
    %v541 = vunpack.c.h.b16 %v86
    %v542 = vunpack.c.l.b16 %v87
    %v543 = vunpack.c.h.b16 %v87
    %v544 = vunpack.c.l.b16 %v88
    %v545 = vunpack.c.h.b16 %v88
    %v546 = vunpack.c.l.b16 %v89
    %v547 = vunpack.c.h.b16 %v89
    %v548 = vunpack.c.l.b16 %v90
    %v549 = vunpack.c.h.b16 %v90
    %v550 = vunpack.c.l.b16 %v91
    %v551 = vunpack.c.h.b16 %v91
    %v552 = vunpack.c.l.b16 %v92
    %v553 = vunpack.c.h.b16 %v92
    %v554 = vunpack.c.l.b16 %v93
    %v555 = vunpack.c.h.b16 %v93
    %v556 = vunpack.c.l.b16 %v94
    %v557 = vunpack.c.h.b16 %v94
    %v558 = vunpack.c.l.b16 %v95
    %v559 = vunpack.c.h.b16 %v95
    %v560 = vunpack.c.l.b16 %v96
    %v561 = vunpack.c.h.b16 %v96
    %v562 = vunpack.c.l.b16 %v97
    %v563 = vunpack.c.h.b16 %v97
    %v564 = vunpack.c.l.b16 %v98
    %v565 = vunpack.c.h.b16 %v98
    %v566 = vunpack.c.l.b16 %v99
    %v567 = vunpack.c.h.b16 %v99
    %v568 = vunpack.c.l.b16 %v100
    %v569 = vunpack.c.h.b16 %v100
    %v570 = vunpack.c.l.b16 %v101
    %v571 = vunpack.c.h.b16 %v101
    %v572 = vunpack.c.l.b16 %v102
    %v573 = vunpack.c.h.b16 %v102
    %v574 = vunpack.c.l.b16 %v103
    %v575 = vunpack.c.h.b16 %v103
    %v576 = vunpack.c.l.b16 %v104
    %v577 = vunpack.c.h.b16 %v104
    %v578 = vunpack.c.l.b16 %v105
    %v579 = vunpack.c.h.b16 %v105
    %v580 = vunpack.c.l.b16 %v106
    %v581 = vunpack.c.h.b16 %v106
    %v582 = vunpack.c.l.b16 %v107
    %v583 = vunpack.c.h.b16 %v107
    %v584 = vunpack.c.l.b16 %v108
    %v585 = vunpack.c.h.b16 %v108
    %v586 = vunpack.c.l.b16 %v109
    %v587 = vunpack.c.h.b16 %v109
    %v588 = vunpack.c.l.b16 %v110
    %v589 = vunpack.c.h.b16 %v110
    %v590 = vunpack.c.l.b16 %v111
    %v591 = vunpack.c.h.b16 %v111
    %v592 = vunpack.c.l.b16 %v112
    %v593 = vunpack.c.h.b16 %v112
    %v594 = vunpack.c.l.b16 %v113
    %v595 = vunpack.c.h.b16 %v113
    %v596 = vunpack.c.l.b16 %v114
    %v597 = vunpack.c.h.b16 %v114
    %v598 = vunpack.c.l.b16 %v115
    %v599 = vunpack.c.h.b16 %v115
    %v600 = vunpack.c.l.b16 %v116
    %v601 = vunpack.c.h.b16 %v116
    %v602 = vunpack.c.l.b16 %v117
    %v603 = vunpack.c.h.b16 %v117
    %v604 = vunpack.c.l.b16 %v118
    %v605 = vunpack.c.h.b16 %v118
    %v606 = vunpack.c.l.b16 %v119
    %v607 = vunpack.c.h.b16 %v119
    %v608 = vunpack.c.l.b16 %v120
    %v609 = vunpack.c.h.b16 %v120
    %v610 = vunpack.c.l.b16 %v121
    %v611 = vunpack.c.h.b16 %v121
    %v612 = vunpack.c.l.b16 %v122
    %v613 = vunpack.c.h.b16 %v122
    %v614 = vunpack.c.l.b16 %v123
    %v615 = vunpack.c.h.b16 %v123
    %v616 = vunpack.c.l.b16 %v124
    %v617 = vunpack.c.h.b16 %v124
    %v618 = vunpack.c.l.b16 %v125
    %v619 = vunpack.c.h.b16 %v125
    %v620 = vunpack.c.l.b16 %v126
    %v621 = vunpack.c.h.b16 %v126
    %v622 = vunpack.c.l.b16 %v127
    %v623 = vunpack.c.h.b16 %v127
    %v624 = vunpack.c.l.b16 %v128
    %v625 = vunpack.c.h.b16 %v128
    %v626 = vunpack.c.l.b16 %v129
    %v627 = vunpack.c.h.b16 %v129
    %v628 = vunpack.c.l.b16 %v130
    %v629 = vunpack.c.h.b16 %v130
    %v630 = vunpack.c.l.b16 %v131
    %v631 = vunpack.c.h.b16 %v131
    %v632 = vunpack.c.l.b16 %v132
    %v633 = vunpack.c.h.b16 %v132
    %v634 = vunpack.c.l.b16 %v133
    %v635 = vunpack.c.h.b16 %v133
    %v636 = vunpack.c.l.b16 %v134
    %v637 = vunpack.c.h.b16 %v134
    %v638 = vunpack.c.l.b16 %v135
    %v639 = vunpack.c.h.b16 %v135
    %v640 = vunpack.c.l.b16 %v136
    %v641 = vunpack.c.h.b16 %v136
    %v642 = vunpack.c.l.b16 %v137
    %v643 = vunpack.c.h.b16 %v137
    %v644 = vunpack.c.l.b16 %v138
    %v645 = vunpack.c.h.b16 %v138
    %v646 = vunpack.c.l.b16 %v139
    %v647 = vunpack.c.h.b16 %v139
    %v648 = vunpack.c.l.b16 %v140
    %v649 = vunpack.c.h.b16 %v140
    %v650 = vunpack.c.l.b16 %v141
    %v651 = vunpack.c.h.b16 %v141
    %v652 = vunpack.c.l.b16 %v142
    %v653 = vunpack.c.h.b16 %v142
    %v654 = vunpack.c.l.b16 %v143
    %v655 = vunpack.c.h.b16 %v143
    %v656 = vunpack.c.l.b16 %v144
    %v657 = vunpack.c.h.b16 %v144
    %v658 = vunpack.c.l.b16 %v145
    %v659 = vunpack.c.h.b16 %v145
    %v660 = vunpack.c.l.b16 %v146
    %v661 = vunpack.c.h.b16 %v146
    %v662 = vunpack.c.l.b16 %v147
    %v663 = vunpack.c.h.b16 %v147
    %v664 = vunpack.c.l.b16 %v148
    %v665 = vunpack.c.h.b16 %v148
    %v666 = vunpack.c.l.b16 %v149
    %v667 = vunpack.c.h.b16 %v149
    %v668 = vunpack.c.l.b16 %v150
    %v669 = vunpack.c.h.b16 %v150
    %v670 = vunpack.c.l.b16 %v151
    %v671 = vunpack.c.h.b16 %v151
    %v672 = vunpack.c.l.b16 %v152
    %v673 = vunpack.c.h.b16 %v152
    %v674 = vunpack.c.l.b16 %v153
    %v675 = vunpack.c.h.b16 %v153
    %v676 = vunpack.c.l.b16 %v154
    %v677 = vunpack.c.h.b16 %v154
    %v678 = vunpack.c.l.b16 %v155
    %v679 = vunpack.c.h.b16 %v155
    %v680 = vunpack.c.l.b16 %v156
    %v681 = vunpack.c.h.b16 %v156
    %v682 = vunpack.c.l.b16 %v157
    %v683 = vunpack.c.h.b16 %v157
    %v684 = vunpack.c.l.b16 %v158
    %v685 = vunpack.c.h.b16 %v158
    %v686 = vunpack.c.l.b16 %v159
    %v687 = vunpack.c.h.b16 %v159
    %v688 = vunpack.c.l.b16 %v160
    %v689 = vunpack.c.h.b16 %v160
    %v690 = vunpack.c.l.b16 %v161
    %v691 = vunpack.c.h.b16 %v161
    %v692 = vunpack.c.l.b16 %v162
    %v693 = vunpack.c.h.b16 %v162
    %v694 = vunpack.c.l.b16 %v163
    %v695 = vunpack.c.h.b16 %v163
    %v696 = vunpack.c.l.b16 %v164
    %v697 = vunpack.c.h.b16 %v164
    %v698 = vunpack.c.l.b16 %v165
    %v699 = vunpack.c.h.b16 %v165
    %v700 = vunpack.c.l.b16 %v166
    %v701 = vunpack.c.h.b16 %v166
    %v702 = vunpack.c.l.b16 %v167
    %v703 = vunpack.c.h.b16 %v167
    %v704 = vunpack.c.l.b16 %v168
    %v705 = vunpack.c.h.b16 %v168
    %v706 = vunpack.c.l.b16 %v169
    %v707 = vunpack.c.h.b16 %v169
    %v708 = vunpack.c.l.b16 %v170
    %v709 = vunpack.c.h.b16 %v170
    %v710 = vunpack.c.l.b16 %v171
    %v711 = vunpack.c.h.b16 %v171
    %v712 = vunpack.c.l.b16 %v172
    %v713 = vunpack.c.h.b16 %v172
    %v714 = vunpack.c.l.b16 %v173
    %v715 = vunpack.c.h.b16 %v173
    %v716 = vunpack.c.l.b16 %v174
    %v717 = vunpack.c.h.b16 %v174
    %v718 = vunpack.c.l.b16 %v175
    %v719 = vunpack.c.h.b16 %v175
    %v720 = vunpack.c.l.b16 %v176
    %v721 = vunpack.c.h.b16 %v176
    %v722 = vunpack.c.l.b16 %v177
    %v723 = vunpack.c.h.b16 %v177
    %v724 = vunpack.c.l.b16 %v178
    %v725 = vunpack.c.h.b16 %v178
    %v726 = vunpack.c.l.b16 %v179
    %v727 = vunpack.c.h.b16 %v179
    %v728 = vunpack.c.l.b16 %v180
    %v729 = vunpack.c.h.b16 %v180
    %v730 = vunpack.c.l.b16 %v181
    %v731 = vunpack.c.h.b16 %v181
    %v732 = vunpack.c.l.b16 %v182
    %v733 = vunpack.c.h.b16 %v182
    %v734 = vunpack.c.l.b16 %v183
    %v735 = vunpack.c.h.b16 %v183
    %v736 = vunpack.c.l.b16 %v184
    %v737 = vunpack.c.h.b16 %v184
    %v738 = vunpack.c.l.b16 %v185
    %v739 = vunpack.c.h.b16 %v185
    %v740 = vunpack.c.l.b16 %v186
    %v741 = vunpack.c.h.b16 %v186
    %v742 = vunpack.c.l.b16 %v187
    %v743 = vunpack.c.h.b16 %v187
    %v744 = vunpack.c.l.b16 %v188
    %v745 = vunpack.c.h.b16 %v188
    %v746 = vunpack.c.l.b16 %v189
    %v747 = vunpack.c.h.b16 %v189
    %v748 = vunpack.c.l.b16 %v190
    %v749 = vunpack.c.h.b16 %v190
    %v750 = vunpack.c.l.b16 %v191
    %v751 = vunpack.c.h.b16 %v191
    %v752 = vunpack.c.l.b16 %v192
    %v753 = vunpack.c.h.b16 %v192
    %v754 = vunpack.c.l.b16 %v193
    %v755 = vunpack.c.h.b16 %v193
    %v756 = vunpack.c.l.b16 %v194
    %v757 = vunpack.c.h.b16 %v194
    %v758 = vunpack.c.l.b16 %v195
    %v759 = vunpack.c.h.b16 %v195
    %v760 = vunpack.c.l.b16 %v196
    %v761 = vunpack.c.h.b16 %v196
    %v762 = vunpack.c.l.b16 %v197
    %v763 = vunpack.c.h.b16 %v197
    %v764 = vunpack.c.l.b16 %v198
    %v765 = vunpack.c.h.b16 %v198
    %v766 = vunpack.c.l.b16 %v199
    %v767 = vunpack.c.h.b16 %v199
    %v768 = vunpack.c.l.b16 %v200
    %v769 = vunpack.c.h.b16 %v200
    %v770 = vunpack.c.l.b16 %v201
    %v771 = vunpack.c.h.b16 %v201
    %v772 = vunpack.c.l.b16 %v202
    %v773 = vunpack.c.h.b16 %v202
    %v774 = vunpack.c.l.b16 %v203
    %v775 = vunpack.c.h.b16 %v203
    %v776 = vunpack.c.l.b16 %v204
    %v777 = vunpack.c.h.b16 %v204
    %v778 = vunpack.c.l.b16 %v205
    %v779 = vunpack.c.h.b16 %v205
    %v780 = vunpack.c.l.b16 %v206
    %v781 = vunpack.c.h.b16 %v206
    %v782 = vunpack.c.l.b16 %v207
    %v783 = vunpack.c.h.b16 %v207
    %v784 = vunpack.c.l.b16 %v208
    %v785 = vunpack.c.h.b16 %v208
    %v786 = vunpack.c.l.b16 %v209
    %v787 = vunpack.c.h.b16 %v209
    %v788 = vunpack.c.l.b16 %v210
    %v789 = vunpack.c.h.b16 %v210
    %v790 = vunpack.c.l.b16 %v211
    %v791 = vunpack.c.h.b16 %v211
    %v792 = vunpack.c.l.b16 %v212
    %v793 = vunpack.c.h.b16 %v212
    %v794 = vunpack.c.l.b16 %v213
    %v795 = vunpack.c.h.b16 %v213
    %v796 = vunpack.c.l.b16 %v214
    %v797 = vunpack.c.h.b16 %v214
    %v798 = vunpack.c.l.b16 %v215
    %v799 = vunpack.c.h.b16 %v215
    %v800 = vunpack.c.l.b16 %v216
    %v801 = vunpack.c.h.b16 %v216
    %v802 = vunpack.c.l.b16 %v217
    %v803 = vunpack.c.h.b16 %v217
    %v804 = vunpack.c.l.b16 %v218
    %v805 = vunpack.c.h.b16 %v218
    %v806 = vunpack.c.l.b16 %v219
    %v807 = vunpack.c.h.b16 %v219
    %v808 = vunpack.c.l.b16 %v220
    %v809 = vunpack.c.h.b16 %v220
    %v810 = vunpack.c.l.b16 %v221
    %v811 = vunpack.c.h.b16 %v221
    %v812 = vunpack.c.l.b16 %v222
    %v813 = vunpack.c.h.b16 %v222
    %v814 = vunpack.c.l.b16 %v223
    %v815 = vunpack.c.h.b16 %v223
    %v816 = vunpack.c.l.b16 %v224
    %v817 = vunpack.c.h.b16 %v224
    %v818 = vunpack.c.l.b16 %v225
    %v819 = vunpack.c.h.b16 %v225
    %v820 = vunpack.c.l.b16 %v226
    %v821 = vunpack.c.h.b16 %v226
    %v822 = vunpack.c.l.b16 %v227
    %v823 = vunpack.c.h.b16 %v227
    %v824 = vunpack.c.l.b16 %v228
    %v825 = vunpack.c.h.b16 %v228
    %v826 = vunpack.c.l.b16 %v229
    %v827 = vunpack.c.h.b16 %v229
    %v828 = vunpack.c.l.b16 %v230
    %v829 = vunpack.c.h.b16 %v230
    %v830 = vunpack.c.l.b16 %v231
    %v831 = vunpack.c.h.b16 %v231
    %v832 = vunpack.c.l.b16 %v232
    %v833 = vunpack.c.h.b16 %v232
    %v834 = vunpack.c.l.b16 %v233
    %v835 = vunpack.c.h.b16 %v233
    %v836 = vunpack.c.l.b16 %v234
    %v837 = vunpack.c.h.b16 %v234
    %v838 = vunpack.c.l.b16 %v235
    %v839 = vunpack.c.h.b16 %v235
    %v840 = vunpack.c.l.b16 %v236
    %v841 = vunpack.c.h.b16 %v236
    %v842 = vunpack.c.l.b16 %v237
    %v843 = vunpack.c.h.b16 %v237
    %v844 = vunpack.c.l.b16 %v238
    %v845 = vunpack.c.h.b16 %v238
    %v846 = vunpack.c.l.b16 %v239
    %v847 = vunpack.c.h.b16 %v239
    %v848 = vunpack.c.l.b16 %v240
    %v849 = vunpack.c.h.b16 %v240
    %v850 = vunpack.c.l.b16 %v241
    %v851 = vunpack.c.h.b16 %v241
    %v852 = vunpack.c.l.b16 %v242
    %v853 = vunpack.c.h.b16 %v242
    %v854 = vunpack.c.l.b16 %v243
    %v855 = vunpack.c.h.b16 %v243
    %v856 = vunpack.c.l.b16 %v244
    %v857 = vunpack.c.h.b16 %v244
    %v858 = vunpack.c.l.b16 %v245
    %v859 = vunpack.c.h.b16 %v245
    %v860 = vunpack.c.l.b16 %v246
    %v861 = vunpack.c.h.b16 %v246
    %v862 = vunpack.c.l.b16 %v247
    %v863 = vunpack.c.h.b16 %v247
    %v864 = vunpack.c.l.b16 %v248
    %v865 = vunpack.c.h.b16 %v248
    %v866 = vunpack.c.l.b16 %v249
    %v867 = vunpack.c.h.b16 %v249
    %v868 = vunpack.c.l.b16 %v250
    %v869 = vunpack.c.h.b16 %v250
    %v870 = vunpack.c.l.b16 %v251
    %v871 = vunpack.c.h.b16 %v251
    %v872 = vunpack.c.l.b16 %v252
    %v873 = vunpack.c.h.b16 %v252
    %v874 = vunpack.c.l.b16 %v253
    %v875 = vunpack.c.h.b16 %v253
    %v876 = vunpack.c.l.b16 %v254
    %v877 = vunpack.c.h.b16 %v254
    %v878 = vunpack.c.l.b16 %v255
    %v879 = vunpack.c.h.b16 %v255
    %v880 = vunpack.c.l.b16 %v256
    %v881 = vunpack.c.h.b16 %v256
    %v882 = vunpack.c.l.b16 %v257
    %v883 = vunpack.c.h.b16 %v257
    %v884 = vunpack.c.l.b16 %v258
    %v885 = vunpack.c.h.b16 %v258
    %v886 = vunpack.c.l.b16 %v259
    %v887 = vunpack.c.h.b16 %v259
    %v888 = vunpack.c.l.b16 %v260
    %v889 = vunpack.c.h.b16 %v260
    %v890 = vunpack.c.l.b16 %v261
    %v891 = vunpack.c.h.b16 %v261
    %v892 = vunpack.c.l.b16 %v262
    %v893 = vunpack.c.h.b16 %v262
    %v894 = vunpack.c.l.b16 %v263
    %v895 = vunpack.c.h.b16 %v263
    %v896 = vunpack.c.l.b16 %v264
    %v897 = vunpack.c.h.b16 %v264
    %v898 = vunpack.c.l.b16 %v265
    %v899 = vunpack.c.h.b16 %v265
    %v900 = vpack.c.b16 %v512, %v508
    %v901 = vpack.c.b16 %v513, %v509
    %v902 = vpack.c.b16 %v514, %v510
    %v903 = vpack.c.b16 %v515, %v511
    %v904 = vpack.c.b16 %v520, %v516
    %v905 = vpack.c.b16 %v521, %v517
    %v906 = vpack.c.b16 %v522, %v518
    %v907 = vpack.c.b16 %v523, %v519
    %v908 = vpack.c.b16 %v528, %v524
    %v909 = vpack.c.b16 %v529, %v525
    %v910 = vpack.c.b16 %v530, %v526
    %v911 = vpack.c.b16 %v531, %v527
    %v912 = vpack.c.b16 %v536, %v532
    %v913 = vpack.c.b16 %v537, %v533
    %v914 = vpack.c.b16 %v538, %v534
    %v915 = vpack.c.b16 %v539, %v535
    %v916 = vpack.c.b16 %v544, %v540
    %v917 = vpack.c.b16 %v545, %v541
    %v918 = vpack.c.b16 %v546, %v542
    %v919 = vpack.c.b16 %v547, %v543
    %v920 = vpack.c.b16 %v552, %v548
    %v921 = vpack.c.b16 %v553, %v549
    %v922 = vpack.c.b16 %v554, %v550
    %v923 = vpack.c.b16 %v555, %v551
    %v924 = vpack.c.b16 %v560, %v556
    %v925 = vpack.c.b16 %v561, %v557
    %v926 = vpack.c.b16 %v562, %v558
    %v927 = vpack.c.b16 %v563, %v559
    %v928 = vpack.c.b16 %v568, %v564
    %v929 = vpack.c.b16 %v569, %v565
    %v930 = vpack.c.b16 %v570, %v566
    %v931 = vpack.c.b16 %v571, %v567
    %v932 = vpack.c.b16 %v576, %v572
    %v933 = vpack.c.b16 %v577, %v573
    %v934 = vpack.c.b16 %v578, %v574
    %v935 = vpack.c.b16 %v579, %v575
    %v936 = vpack.c.b16 %v584, %v580
    %v937 = vpack.c.b16 %v585, %v581
    %v938 = vpack.c.b16 %v586, %v582
    %v939 = vpack.c.b16 %v587, %v583
    %v940 = vpack.c.b16 %v592, %v588
    %v941 = vpack.c.b16 %v593, %v589
    %v942 = vpack.c.b16 %v594, %v590
    %v943 = vpack.c.b16 %v595, %v591
    %v944 = vpack.c.b16 %v600, %v596
    %v945 = vpack.c.b16 %v601, %v597
    %v946 = vpack.c.b16 %v602, %v598
    %v947 = vpack.c.b16 %v603, %v599
    %v948 = vpack.c.b16 %v608, %v604
    %v949 = vpack.c.b16 %v609, %v605
    %v950 = vpack.c.b16 %v610, %v606
    %v951 = vpack.c.b16 %v611, %v607
    %v952 = vpack.c.b16 %v616, %v612
    %v953 = vpack.c.b16 %v617, %v613
    %v954 = vpack.c.b16 %v618, %v614
    %v955 = vpack.c.b16 %v619, %v615
    %v956 = vpack.c.b16 %v624, %v620
    %v957 = vpack.c.b16 %v625, %v621
    %v958 = vpack.c.b16 %v626, %v622
    %v959 = vpack.c.b16 %v627, %v623
    %v960 = vpack.c.b16 %v632, %v628
    %v961 = vpack.c.b16 %v633, %v629
    %v962 = vpack.c.b16 %v634, %v630
    %v963 = vpack.c.b16 %v635, %v631
    %v964 = vpack.c.b16 %v640, %v636
    %v965 = vpack.c.b16 %v641, %v637
    %v966 = vpack.c.b16 %v642, %v638
    %v967 = vpack.c.b16 %v643, %v639
    %v968 = vpack.c.b16 %v648, %v644
    %v969 = vpack.c.b16 %v649, %v645
    %v970 = vpack.c.b16 %v650, %v646
    %v971 = vpack.c.b16 %v651, %v647
    %v972 = vpack.c.b16 %v656, %v652
    %v973 = vpack.c.b16 %v657, %v653
    %v974 = vpack.c.b16 %v658, %v654
    %v975 = vpack.c.b16 %v659, %v655
    %v976 = vpack.c.b16 %v664, %v660
    %v977 = vpack.c.b16 %v665, %v661
    %v978 = vpack.c.b16 %v666, %v662
    %v979 = vpack.c.b16 %v667, %v663
    %v980 = vpack.c.b16 %v672, %v668
    %v981 = vpack.c.b16 %v673, %v669
    %v982 = vpack.c.b16 %v674, %v670
    %v983 = vpack.c.b16 %v675, %v671
    %v984 = vpack.c.b16 %v680, %v676
    %v985 = vpack.c.b16 %v681, %v677
    %v986 = vpack.c.b16 %v682, %v678
    %v987 = vpack.c.b16 %v683, %v679
    %v988 = vpack.c.b16 %v688, %v684
    %v989 = vpack.c.b16 %v689, %v685
    %v990 = vpack.c.b16 %v690, %v686
    %v991 = vpack.c.b16 %v691, %v687
    %v992 = vpack.c.b16 %v696, %v692
    %v993 = vpack.c.b16 %v697, %v693
    %v994 = vpack.c.b16 %v698, %v694
    %v995 = vpack.c.b16 %v699, %v695
    %v996 = vpack.c.b16 %v704, %v700
    %v997 = vpack.c.b16 %v705, %v701
    %v998 = vpack.c.b16 %v706, %v702
    %v999 = vpack.c.b16 %v707, %v703
    %v1000 = vpack.c.b16 %v712, %v708
    %v1001 = vpack.c.b16 %v713, %v709
    %v1002 = vpack.c.b16 %v714, %v710
    %v1003 = vpack.c.b16 %v715, %v711
    %v1004 = vpack.c.b16 %v720, %v716
    %v1005 = vpack.c.b16 %v721, %v717
    %v1006 = vpack.c.b16 %v722, %v718
    %v1007 = vpack.c.b16 %v723, %v719
    %v1008 = vpack.c.b16 %v728, %v724
    %v1009 = vpack.c.b16 %v729, %v725
    %v1010 = vpack.c.b16 %v730, %v726
    %v1011 = vpack.c.b16 %v731, %v727
    %v1012 = vpack.c.b16 %v736, %v732
    %v1013 = vpack.c.b16 %v737, %v733
    %v1014 = vpack.c.b16 %v738, %v734
    %v1015 = vpack.c.b16 %v739, %v735
    %v1016 = vpack.c.b16 %v744, %v740
    %v1017 = vpack.c.b16 %v745, %v741
    %v1018 = vpack.c.b16 %v746, %v742
    %v1019 = vpack.c.b16 %v747, %v743
    %v1020 = vpack.c.b16 %v752, %v748
    %v1021 = vpack.c.b16 %v753, %v749
    %v1022 = vpack.c.b16 %v754, %v750
    %v1023 = vpack.c.b16 %v755, %v751
    %v1024 = vpack.c.b16 %v760, %v756
    %v1025 = vpack.c.b16 %v761, %v757
    %v1026 = vpack.c.b16 %v762, %v758
    %v1027 = vpack.c.b16 %v763, %v759
    %v1028 = vpack.c.b16 %v768, %v764
    %v1029 = vpack.c.b16 %v769, %v765
    %v1030 = vpack.c.b16 %v770, %v766
    %v1031 = vpack.c.b16 %v771, %v767
    %v1032 = vpack.c.b16 %v776, %v772
    %v1033 = vpack.c.b16 %v777, %v773
    %v1034 = vpack.c.b16 %v778, %v774
    %v1035 = vpack.c.b16 %v779, %v775
    %v1036 = vpack.c.b16 %v784, %v780
    %v1037 = vpack.c.b16 %v785, %v781
    %v1038 = vpack.c.b16 %v786, %v782
    %v1039 = vpack.c.b16 %v787, %v783
    %v1040 = vpack.c.b16 %v792, %v788
    %v1041 = vpack.c.b16 %v793, %v789
    %v1042 = vpack.c.b16 %v794, %v790
    %v1043 = vpack.c.b16 %v795, %v791
    %v1044 = vpack.c.b16 %v800, %v796
    %v1045 = vpack.c.b16 %v801, %v797
    %v1046 = vpack.c.b16 %v802, %v798
    %v1047 = vpack.c.b16 %v803, %v799
    %v1048 = vpack.c.b16 %v808, %v804
    %v1049 = vpack.c.b16 %v809, %v805
    %v1050 = vpack.c.b16 %v810, %v806
    %v1051 = vpack.c.b16 %v811, %v807
    %v1052 = vpack.c.b16 %v816, %v812
    %v1053 = vpack.c.b16 %v817, %v813
    %v1054 = vpack.c.b16 %v818, %v814
    %v1055 = vpack.c.b16 %v819, %v815
    %v1056 = vpack.c.b16 %v824, %v820
    %v1057 = vpack.c.b16 %v825, %v821
    %v1058 = vpack.c.b16 %v826, %v822
    %v1059 = vpack.c.b16 %v827, %v823
    %v1060 = vpack.c.b16 %v832, %v828
    %v1061 = vpack.c.b16 %v833, %v829
    %v1062 = vpack.c.b16 %v834, %v830
    %v1063 = vpack.c.b16 %v835, %v831
    %v1064 = vpack.c.b16 %v840, %v836
    %v1065 = vpack.c.b16 %v841, %v837
    %v1066 = vpack.c.b16 %v842, %v838
    %v1067 = vpack.c.b16 %v843, %v839
    %v1068 = vpack.c.b16 %v848, %v844
    %v1069 = vpack.c.b16 %v849, %v845
    %v1070 = vpack.c.b16 %v850, %v846
    %v1071 = vpack.c.b16 %v851, %v847
    %v1072 = vpack.c.b16 %v856, %v852
    %v1073 = vpack.c.b16 %v857, %v853
    %v1074 = vpack.c.b16 %v858, %v854
    %v1075 = vpack.c.b16 %v859, %v855
    %v1076 = vpack.c.b16 %v864, %v860
    %v1077 = vpack.c.b16 %v865, %v861
    %v1078 = vpack.c.b16 %v866, %v862
    %v1079 = vpack.c.b16 %v867, %v863
    %v1080 = vpack.c.b16 %v872, %v868
    %v1081 = vpack.c.b16 %v873, %v869
    %v1082 = vpack.c.b16 %v874, %v870
    %v1083 = vpack.c.b16 %v875, %v871
    %v1084 = vpack.c.b16 %v880, %v876
    %v1085 = vpack.c.b16 %v881, %v877
    %v1086 = vpack.c.b16 %v882, %v878
    %v1087 = vpack.c.b16 %v883, %v879
    %v1088 = vpack.c.b16 %v888, %v884
    %v1089 = vpack.c.b16 %v889, %v885
    %v1090 = vpack.c.b16 %v890, %v886
    %v1091 = vpack.c.b16 %v891, %v887
    %v1092 = vpack.c.b16 %v896, %v892
    %v1093 = vpack.c.b16 %v897, %v893
    %v1094 = vpack.c.b16 %v898, %v894
    %v1095 = vpack.c.b16 %v899, %v895
    %vm1292 = vcmask 130048
    %v1294 = vsel %vm1292, %v305, 0
    %1296 = vmatprep.subr.bf16.mxu0 %v901
    %1297 = vmatpush1.bf16.msra.mxu0 %v900
    %1298 = vmatprep.subr.bf16.mxu0 %v905
    %1299 = vmatpush1.bf16.msra.mxu0 %v904
    %1300 = vmatprep.subr.bf16.mxu0 %v909
    %1301 = vmatpush1.bf16.msra.mxu0 %v908
    %1302 = vmatprep.subr.bf16.mxu0 %v913
    %1303 = vmatpush1.bf16.msra.mxu0 %v912
    %1304 = vmatprep.subr.bf16.mxu0 %v917
    %1305 = vmatpush1.bf16.msra.mxu0 %v916
    %1306 = vmatprep.subr.bf16.mxu0 %v921
    %1307 = vmatpush1.bf16.msra.mxu0 %v920
    %1308 = vmatprep.subr.bf16.mxu0 %v925
    %1309 = vmatpush1.bf16.msra.mxu0 %v924
    %1310 = vmatprep.subr.bf16.mxu0 %v929
    %1311 = vmatpush1.bf16.msra.mxu0 %v928
    %1312 = vmatprep.subr.bf16.mxu0 %v933
    %1313 = vmatpush1.bf16.msra.mxu0 %v932
    %1314 = vmatprep.subr.bf16.mxu0 %v937
    %1315 = vmatpush1.bf16.msra.mxu0 %v936
    %1316 = vmatprep.subr.bf16.mxu0 %v941
    %1317 = vmatpush1.bf16.msra.mxu0 %v940
    %1318 = vmatprep.subr.bf16.mxu0 %v945
    %1319 = vmatpush1.bf16.msra.mxu0 %v944
    %1320 = vmatprep.subr.bf16.mxu0 %v949
    %1321 = vmatpush1.bf16.msra.mxu0 %v948
    %1322 = vmatprep.subr.bf16.mxu0 %v953
    %1323 = vmatpush1.bf16.msra.mxu0 %v952
    %1324 = vmatprep.subr.bf16.mxu0 %v957
    %1325 = vmatpush1.bf16.msra.mxu0 %v956
    %1326 = vmatprep.subr.bf16.mxu0 %v961
    %1327 = vmatpush1.bf16.msra.mxu0 %v960
    %1328 = vmatprep.mubr.bf16.mxu0 %v300
    %1329 = vmatmul.mubr.bf16.gmra.mrb[0].mxu0 %v299
    %v1330 = vpop.f32.mrb[0].mxu0
    %v1331 = vadd.f32 %v271, %v1330
    %v1332 = vpop.f32.mrb[0].mxu0
    %v1333 = vadd.f32 %v275, %v1332
    %v1334 = vpop.f32.mrb[0].mxu0
    %v1335 = vpop.f32.mrb[0].mxu0
    %1336 = vdwg.mxu0
    %1337 = vmatprep.subr.bf16.mxu0 %v965
    %1338 = vmatpush1.bf16.msra.mxu0 %v964
    %1339 = vmatprep.subr.bf16.mxu0 %v969
    %1340 = vmatpush1.bf16.msra.mxu0 %v968
    %1341 = vmatprep.subr.bf16.mxu0 %v973
    %1342 = vmatpush1.bf16.msra.mxu0 %v972
    %1343 = vmatprep.subr.bf16.mxu0 %v977
    %1344 = vmatpush1.bf16.msra.mxu0 %v976
    %1345 = vmatprep.subr.bf16.mxu0 %v981
    %1346 = vmatpush1.bf16.msra.mxu0 %v980
    %1347 = vmatprep.subr.bf16.mxu0 %v985
    %1348 = vmatpush1.bf16.msra.mxu0 %v984
    %1349 = vmatprep.subr.bf16.mxu0 %v989
    %1350 = vmatpush1.bf16.msra.mxu0 %v988
    %1351 = vmatprep.subr.bf16.mxu0 %v993
    %1352 = vmatpush1.bf16.msra.mxu0 %v992
    %1353 = vmatprep.subr.bf16.mxu0 %v997
    %1354 = vmatpush1.bf16.msra.mxu0 %v996
    %1355 = vmatprep.subr.bf16.mxu0 %v1001
    %1356 = vmatpush1.bf16.msra.mxu0 %v1000
    %1357 = vmatprep.subr.bf16.mxu0 %v1005
    %1358 = vmatpush1.bf16.msra.mxu0 %v1004
    %1359 = vmatprep.subr.bf16.mxu0 %v1009
    %1360 = vmatpush1.bf16.msra.mxu0 %v1008
    %1361 = vmatprep.subr.bf16.mxu0 %v1013
    %1362 = vmatpush1.bf16.msra.mxu0 %v1012
    %1363 = vmatprep.subr.bf16.mxu0 %v1017
    %1364 = vmatpush1.bf16.msra.mxu0 %v1016
    %1365 = vmatprep.subr.bf16.mxu0 %v1021
    %1366 = vmatpush1.bf16.msra.mxu0 %v1020
    %1367 = vmatprep.subr.bf16.mxu0 %v1025
    %1368 = vmatpush1.bf16.msra.mxu0 %v1024
    %1369 = vmatprep.mubr.bf16.mxu0 %v302
    %1370 = vmatmul.mubr.bf16.gmra.mrb[0].mxu0 %v301
    %v1371 = vpop.f32.mrb[0].mxu0
    %v1372 = vadd.f32 %v1331, %v1371
    %v1373 = vpop.f32.mrb[0].mxu0
    %v1374 = vadd.f32 %v1333, %v1373
    %v1375 = vpop.f32.mrb[0].mxu0
    %v1376 = vpop.f32.mrb[0].mxu0
    %1377 = vdwg.mxu0
    %1378 = vmatprep.subr.bf16.mxu0 %v1029
    %1379 = vmatpush1.bf16.msra.mxu0 %v1028
    %1380 = vmatprep.subr.bf16.mxu0 %v1033
    %1381 = vmatpush1.bf16.msra.mxu0 %v1032
    %1382 = vmatprep.subr.bf16.mxu0 %v1037
    %1383 = vmatpush1.bf16.msra.mxu0 %v1036
    %1384 = vmatprep.subr.bf16.mxu0 %v1041
    %1385 = vmatpush1.bf16.msra.mxu0 %v1040
    %1386 = vmatprep.subr.bf16.mxu0 %v1045
    %1387 = vmatpush1.bf16.msra.mxu0 %v1044
    %1388 = vmatprep.subr.bf16.mxu0 %v1049
    %1389 = vmatpush1.bf16.msra.mxu0 %v1048
    %1390 = vmatprep.subr.bf16.mxu0 %v1053
    %1391 = vmatpush1.bf16.msra.mxu0 %v1052
    %1392 = vmatprep.subr.bf16.mxu0 %v1057
    %1393 = vmatpush1.bf16.msra.mxu0 %v1056
    %1394 = vmatprep.subr.bf16.mxu0 %v1061
    %1395 = vmatpush1.bf16.msra.mxu0 %v1060
    %1396 = vmatprep.subr.bf16.mxu0 %v1065
    %1397 = vmatpush1.bf16.msra.mxu0 %v1064
    %1398 = vmatprep.subr.bf16.mxu0 %v1069
    %1399 = vmatpush1.bf16.msra.mxu0 %v1068
    %1400 = vmatprep.subr.bf16.mxu0 %v1073
    %1401 = vmatpush1.bf16.msra.mxu0 %v1072
    %1402 = vmatprep.subr.bf16.mxu0 %v1077
    %1403 = vmatpush1.bf16.msra.mxu0 %v1076
    %1404 = vmatprep.subr.bf16.mxu0 %v1081
    %1405 = vmatpush1.bf16.msra.mxu0 %v1080
    %1406 = vmatprep.subr.bf16.mxu0 %v1085
    %1407 = vmatpush1.bf16.msra.mxu0 %v1084
    %1408 = vmatprep.subr.bf16.mxu0 %v1089
    %1409 = vmatpush1.bf16.msra.mxu0 %v1088
    %1410 = vmatprep.mubr.bf16.mxu0 %v304
    %1411 = vmatmul.mubr.bf16.gmra.mrb[0].mxu0 %v303
    %v1412 = vpop.f32.mrb[0].mxu0
    %v1413 = vadd.f32 %v1372, %v1412
    %v1414 = vpop.f32.mrb[0].mxu0
    %v1415 = vadd.f32 %v1374, %v1414
    %v1416 = vpop.f32.mrb[0].mxu0
    %v1417 = vpop.f32.mrb[0].mxu0
    %1418 = vdwg.mxu0
    %1419 = vmatprep.subr.bf16.mxu0 %v1093
    %1420 = vmatpush1.bf16.msra.mxu0 %v1092
    %1421 = vmatprep.subr.bf16.mxu0 0
    %1422 = vmatpush1.bf16.msra.mxu0 0
    %1423 = vmatprep.subr.bf16.mxu0 0
    %1424 = vmatpush1.bf16.msra.mxu0 0
    %1425 = vmatprep.subr.bf16.mxu0 0
    %1426 = vmatpush1.bf16.msra.mxu0 0
    %1427 = vmatprep.subr.bf16.mxu0 0
    %1428 = vmatpush1.bf16.msra.mxu0 0
    %1429 = vmatprep.subr.bf16.mxu0 0
    %1430 = vmatpush1.bf16.msra.mxu0 0
    %1431 = vmatprep.subr.bf16.mxu0 0
    %1432 = vmatpush1.bf16.msra.mxu0 0
    %1433 = vmatprep.subr.bf16.mxu0 0
    %1434 = vmatpush1.bf16.msra.mxu0 0
    %1435 = vmatprep.subr.bf16.mxu0 0
    %1436 = vmatpush1.bf16.msra.mxu0 0
    %1437 = vmatprep.subr.bf16.mxu0 0
    %1438 = vmatpush1.bf16.msra.mxu0 0
    %1439 = vmatprep.subr.bf16.mxu0 0
    %1440 = vmatpush1.bf16.msra.mxu0 0
    %1441 = vmatprep.subr.bf16.mxu0 0
    %1442 = vmatpush1.bf16.msra.mxu0 0
    %1443 = vmatprep.subr.bf16.mxu0 0
    %1444 = vmatpush1.bf16.msra.mxu0 0
    %1445 = vmatprep.subr.bf16.mxu0 0
    %1446 = vmatpush1.bf16.msra.mxu0 0
    %1447 = vmatprep.subr.bf16.mxu0 0
    %1448 = vmatpush1.bf16.msra.mxu0 0
    %1449 = vmatprep.subr.bf16.mxu0 0
    %1450 = vmatpush1.bf16.msra.mxu0 0
    %1451 = vmatprep.mubr.bf16.mxu0 0
    %1452 = vmatmul.mubr.bf16.gmra.mrb[0].mxu0 %v1294
    %v1453 = vpop.f32.mrb[0].mxu0
    %v1454 = vadd.f32 %v1413, %v1453
    %v1455 = vpop.f32.mrb[0].mxu0
    %v1456 = vadd.f32 %v1415, %v1455
    %v1457 = vpop.f32.mrb[0].mxu0
    %v1458 = vpop.f32.mrb[0].mxu0
    %1459 = vdwg.mxu0
    %1460 = vmatprep.subr.bf16.mxu0 %v903
    %1461 = vmatpush1.bf16.msra.mxu0 %v902
    %1462 = vmatprep.subr.bf16.mxu0 %v907
    %1463 = vmatpush1.bf16.msra.mxu0 %v906
    %1464 = vmatprep.subr.bf16.mxu0 %v911
    %1465 = vmatpush1.bf16.msra.mxu0 %v910
    %1466 = vmatprep.subr.bf16.mxu0 %v915
    %1467 = vmatpush1.bf16.msra.mxu0 %v914
    %1468 = vmatprep.subr.bf16.mxu0 %v919
    %1469 = vmatpush1.bf16.msra.mxu0 %v918
    %1470 = vmatprep.subr.bf16.mxu0 %v923
    %1471 = vmatpush1.bf16.msra.mxu0 %v922
    %1472 = vmatprep.subr.bf16.mxu0 %v927
    %1473 = vmatpush1.bf16.msra.mxu0 %v926
    %1474 = vmatprep.subr.bf16.mxu0 %v931
    %1475 = vmatpush1.bf16.msra.mxu0 %v930
    %1476 = vmatprep.subr.bf16.mxu0 %v935
    %1477 = vmatpush1.bf16.msra.mxu0 %v934
    %1478 = vmatprep.subr.bf16.mxu0 %v939
    %1479 = vmatpush1.bf16.msra.mxu0 %v938
    %1480 = vmatprep.subr.bf16.mxu0 %v943
    %1481 = vmatpush1.bf16.msra.mxu0 %v942
    %1482 = vmatprep.subr.bf16.mxu0 %v947
    %1483 = vmatpush1.bf16.msra.mxu0 %v946
    %1484 = vmatprep.subr.bf16.mxu0 %v951
    %1485 = vmatpush1.bf16.msra.mxu0 %v950
    %1486 = vmatprep.subr.bf16.mxu0 %v955
    %1487 = vmatpush1.bf16.msra.mxu0 %v954
    %1488 = vmatprep.subr.bf16.mxu0 %v959
    %1489 = vmatpush1.bf16.msra.mxu0 %v958
    %1490 = vmatprep.subr.bf16.mxu0 %v963
    %1491 = vmatpush1.bf16.msra.mxu0 %v962
    %1492 = vmatprep.mubr.bf16.mxu0 %v300
    %1493 = vmatmul.mubr.bf16.gmra.mrb[0].mxu0 %v299
    %v1494 = vpop.f32.mrb[0].mxu0
    %v1495 = vadd.f32 %v279, %v1494
    %v1496 = vpop.f32.mrb[0].mxu0
    %v1497 = vadd.f32 %v283, %v1496
    %v1498 = vpop.f32.mrb[0].mxu0
    %v1499 = vpop.f32.mrb[0].mxu0
    %1500 = vdwg.mxu0
    %1501 = vmatprep.subr.bf16.mxu0 %v967
    %1502 = vmatpush1.bf16.msra.mxu0 %v966
    %1503 = vmatprep.subr.bf16.mxu0 %v971
    %1504 = vmatpush1.bf16.msra.mxu0 %v970
    %1505 = vmatprep.subr.bf16.mxu0 %v975
    %1506 = vmatpush1.bf16.msra.mxu0 %v974
    %1507 = vmatprep.subr.bf16.mxu0 %v979
    %1508 = vmatpush1.bf16.msra.mxu0 %v978
    %1509 = vmatprep.subr.bf16.mxu0 %v983
    %1510 = vmatpush1.bf16.msra.mxu0 %v982
    %1511 = vmatprep.subr.bf16.mxu0 %v987
    %1512 = vmatpush1.bf16.msra.mxu0 %v986
    %1513 = vmatprep.subr.bf16.mxu0 %v991
    %1514 = vmatpush1.bf16.msra.mxu0 %v990
    %1515 = vmatprep.subr.bf16.mxu0 %v995
    %1516 = vmatpush1.bf16.msra.mxu0 %v994
    %1517 = vmatprep.subr.bf16.mxu0 %v999
    %1518 = vmatpush1.bf16.msra.mxu0 %v998
    %1519 = vmatprep.subr.bf16.mxu0 %v1003
    %1520 = vmatpush1.bf16.msra.mxu0 %v1002
    %1521 = vmatprep.subr.bf16.mxu0 %v1007
    %1522 = vmatpush1.bf16.msra.mxu0 %v1006
    %1523 = vmatprep.subr.bf16.mxu0 %v1011
    %1524 = vmatpush1.bf16.msra.mxu0 %v1010
    %1525 = vmatprep.subr.bf16.mxu0 %v1015
    %1526 = vmatpush1.bf16.msra.mxu0 %v1014
    %1527 = vmatprep.subr.bf16.mxu0 %v1019
    %1528 = vmatpush1.bf16.msra.mxu0 %v1018
    %1529 = vmatprep.subr.bf16.mxu0 %v1023
    %1530 = vmatpush1.bf16.msra.mxu0 %v1022
    %1531 = vmatprep.subr.bf16.mxu0 %v1027
    %1532 = vmatpush1.bf16.msra.mxu0 %v1026
    %1533 = vmatprep.mubr.bf16.mxu0 %v302
    %1534 = vmatmul.mubr.bf16.gmra.mrb[0].mxu0 %v301
    %v1535 = vpop.f32.mrb[0].mxu0
    %v1536 = vadd.f32 %v1495, %v1535
    %v1537 = vpop.f32.mrb[0].mxu0
    %v1538 = vadd.f32 %v1497, %v1537
    %v1539 = vpop.f32.mrb[0].mxu0
    %v1540 = vpop.f32.mrb[0].mxu0
    %1541 = vdwg.mxu0
    %1542 = vmatprep.subr.bf16.mxu0 %v1031
    %1543 = vmatpush1.bf16.msra.mxu0 %v1030
    %1544 = vmatprep.subr.bf16.mxu0 %v1035
    %1545 = vmatpush1.bf16.msra.mxu0 %v1034
    %1546 = vmatprep.subr.bf16.mxu0 %v1039
    %1547 = vmatpush1.bf16.msra.mxu0 %v1038
    %1548 = vmatprep.subr.bf16.mxu0 %v1043
    %1549 = vmatpush1.bf16.msra.mxu0 %v1042
    %1550 = vmatprep.subr.bf16.mxu0 %v1047
    %1551 = vmatpush1.bf16.msra.mxu0 %v1046
    %1552 = vmatprep.subr.bf16.mxu0 %v1051
    %1553 = vmatpush1.bf16.msra.mxu0 %v1050
    %1554 = vmatprep.subr.bf16.mxu0 %v1055
    %1555 = vmatpush1.bf16.msra.mxu0 %v1054
    %1556 = vmatprep.subr.bf16.mxu0 %v1059
    %1557 = vmatpush1.bf16.msra.mxu0 %v1058
    %1558 = vmatprep.subr.bf16.mxu0 %v1063
    %1559 = vmatpush1.bf16.msra.mxu0 %v1062
    %1560 = vmatprep.subr.bf16.mxu0 %v1067
    %1561 = vmatpush1.bf16.msra.mxu0 %v1066
    %1562 = vmatprep.subr.bf16.mxu0 %v1071
    %1563 = vmatpush1.bf16.msra.mxu0 %v1070
    %1564 = vmatprep.subr.bf16.mxu0 %v1075
    %1565 = vmatpush1.bf16.msra.mxu0 %v1074
    %1566 = vmatprep.subr.bf16.mxu0 %v1079
    %1567 = vmatpush1.bf16.msra.mxu0 %v1078
    %1568 = vmatprep.subr.bf16.mxu0 %v1083
    %1569 = vmatpush1.bf16.msra.mxu0 %v1082
    %1570 = vmatprep.subr.bf16.mxu0 %v1087
    %1571 = vmatpush1.bf16.msra.mxu0 %v1086
    %1572 = vmatprep.subr.bf16.mxu0 %v1091
    %1573 = vmatpush1.bf16.msra.mxu0 %v1090
    %1574 = vmatprep.mubr.bf16.mxu0 %v304
    %1575 = vmatmul.mubr.bf16.gmra.mrb[0].mxu0 %v303
    %v1576 = vpop.f32.mrb[0].mxu0
    %v1577 = vadd.f32 %v1536, %v1576
    %v1578 = vpop.f32.mrb[0].mxu0
    %v1579 = vadd.f32 %v1538, %v1578
    %v1580 = vpop.f32.mrb[0].mxu0
    %v1581 = vpop.f32.mrb[0].mxu0
    %1582 = vdwg.mxu0
    %1583 = vmatprep.subr.bf16.mxu0 %v1095
    %1584 = vmatpush1.bf16.msra.mxu0 %v1094
    %1585 = vmatprep.subr.bf16.mxu0 0
    %1586 = vmatpush1.bf16.msra.mxu0 0
    %1587 = vmatprep.subr.bf16.mxu0 0
    %1588 = vmatpush1.bf16.msra.mxu0 0
    %1589 = vmatprep.subr.bf16.mxu0 0
    %1590 = vmatpush1.bf16.msra.mxu0 0
    %1591 = vmatprep.subr.bf16.mxu0 0
    %1592 = vmatpush1.bf16.msra.mxu0 0
    %1593 = vmatprep.subr.bf16.mxu0 0
    %1594 = vmatpush1.bf16.msra.mxu0 0
    %1595 = vmatprep.subr.bf16.mxu0 0
    %1596 = vmatpush1.bf16.msra.mxu0 0
    %1597 = vmatprep.subr.bf16.mxu0 0
    %1598 = vmatpush1.bf16.msra.mxu0 0
    %1599 = vmatprep.subr.bf16.mxu0 0
    %1600 = vmatpush1.bf16.msra.mxu0 0
    %1601 = vmatprep.subr.bf16.mxu0 0
    %1602 = vmatpush1.bf16.msra.mxu0 0
    %1603 = vmatprep.subr.bf16.mxu0 0
    %1604 = vmatpush1.bf16.msra.mxu0 0
    %1605 = vmatprep.subr.bf16.mxu0 0
    %1606 = vmatpush1.bf16.msra.mxu0 0
    %1607 = vmatprep.subr.bf16.mxu0 0
    %1608 = vmatpush1.bf16.msra.mxu0 0
    %1609 = vmatprep.subr.bf16.mxu0 0
    %1610 = vmatpush1.bf16.msra.mxu0 0
    %1611 = vmatprep.subr.bf16.mxu0 0
    %1612 = vmatpush1.bf16.msra.mxu0 0
    %1613 = vmatprep.subr.bf16.mxu0 0
    %1614 = vmatpush1.bf16.msra.mxu0 0
    %1615 = vmatprep.mubr.bf16.mxu0 0
    %1616 = vmatmul.mubr.bf16.gmra.mrb[0].mxu0 %v1294
    %v1617 = vpop.f32.mrb[0].mxu0
    %v1618 = vadd.f32 %v1577, %v1617
    %v1619 = vpop.f32.mrb[0].mxu0
    %v1620 = vadd.f32 %v1579, %v1619
    %v1621 = vpop.f32.mrb[0].mxu0
    %v1622 = vpop.f32.mrb[0].mxu0
    %1623 = vdwg.mxu0
    %v1624 = vmax.f32 %v1454, 0.0
    %v1625 = vmax.f32 %v1456, 0.0
    %v1626 = vmax.f32 %v1618, 0.0
    %v1627 = vmax.f32 %v1620, 0.0
    %v1628 = vpack.c.bf16 %v1624, %v1624
    %v1629 = vpack.c.bf16 %v1625, %v1625
    %v1630 = vpack.c.bf16 %v1626, %v1626
    %v1631 = vpack.c.bf16 %v1627, %v1627
    %v1632 = vld [vmem:[#allocation7] sm:$0xf]
    %v1633 = vld [vmem:[#allocation7 + $0x4] sm:$0xf]
    %v1634 = vld [vmem:[#allocation7 + $0x8] sm:$0xf]
    %v1635 = vld [vmem:[#allocation7 + $0xc] sm:$0xf]
    %v1636 = vld [vmem:[#allocation7 + $0x10] sm:$0xf]
    %v1637 = vld [vmem:[#allocation7 + $0x14] sm:$0xf]
    %v1638 = vld [vmem:[#allocation7 + $0x18] sm:$0xf]
    %v1639 = vld [vmem:[#allocation7 + $0x1c] sm:$0xf]
    %v1640 = vld [vmem:[#allocation7 + $0x20] sm:$0xf]
    %v1641 = vld [vmem:[#allocation7 + $0x24] sm:$0xf]
    %v1642 = vld [vmem:[#allocation7 + $0x28] sm:$0xf]
    %v1643 = vld [vmem:[#allocation7 + $0x2c] sm:$0xf]
    %v1644 = vld [vmem:[#allocation7 + $0x30] sm:$0xf]
    %v1645 = vld [vmem:[#allocation7 + $0x34] sm:$0xf]
    %v1646 = vld [vmem:[#allocation7 + $0x38] sm:$0xf]
    %v1647 = vld [vmem:[#allocation7 + $0x3c] sm:$0xf]
    %v1648 = vld [vmem:[#allocation7 + $0x40] sm:$0xf]
    %v1649 = vld [vmem:[#allocation7 + $0x44] sm:$0xf]
    %v1650 = vld [vmem:[#allocation7 + $0x48] sm:$0xf]
    %v1651 = vld [vmem:[#allocation7 + $0x4c] sm:$0xf]
    %v1652 = vld [vmem:[#allocation7 + $0x50] sm:$0xf]
    %v1653 = vld [vmem:[#allocation7 + $0x54] sm:$0xf]
    %v1654 = vld [vmem:[#allocation7 + $0x58] sm:$0xf]
    %v1655 = vld [vmem:[#allocation7 + $0x5c] sm:$0xf]
    %v1656 = vld [vmem:[#allocation7 + $0x60] sm:$0xf]
    %v1657 = vld [vmem:[#allocation7 + $0x64] sm:$0xf]
    %v1658 = vld [vmem:[#allocation7 + $0x68] sm:$0xf]
    %v1659 = vld [vmem:[#allocation7 + $0x6c] sm:$0xf]
    %v1660 = vld [vmem:[#allocation7 + $0x70] sm:$0xf]
    %v1661 = vld [vmem:[#allocation7 + $0x74] sm:$0xf]
    %v1662 = vld [vmem:[#allocation7 + $0x78] sm:$0xf]
    %v1663 = vld [vmem:[#allocation7 + $0x7c] sm:$0xf]
    %v1664 = vld [vmem:[#allocation7 + $0x80] sm:$0xf]
    %v1665 = vld [vmem:[#allocation7 + $0x84] sm:$0xf]
    %v1666 = vld [vmem:[#allocation7 + $0x88] sm:$0xf]
    %v1667 = vld [vmem:[#allocation7 + $0x8c] sm:$0xf]
    %v1668 = vld [vmem:[#allocation7 + $0x90] sm:$0xf]
    %v1669 = vld [vmem:[#allocation7 + $0x94] sm:$0xf]
    %v1670 = vld [vmem:[#allocation7 + $0x98] sm:$0xf]
    %v1671 = vld [vmem:[#allocation7 + $0x9c] sm:$0xf]
    %v1672 = vld [vmem:[#allocation7 + $0xa0] sm:$0xf]
    %v1673 = vld [vmem:[#allocation7 + $0xa4] sm:$0xf]
    %v1674 = vld [vmem:[#allocation7 + $0xa8] sm:$0xf]
    %v1675 = vld [vmem:[#allocation7 + $0xac] sm:$0xf]
    %v1676 = vld [vmem:[#allocation7 + $0xb0] sm:$0xf]
    %v1677 = vld [vmem:[#allocation7 + $0xb4] sm:$0xf]
    %v1678 = vld [vmem:[#allocation7 + $0xb8] sm:$0xf]
    %v1679 = vld [vmem:[#allocation7 + $0xbc] sm:$0xf]
    %v1680 = vld [vmem:[#allocation7 + $0xc0] sm:$0xf]
    %v1681 = vld [vmem:[#allocation7 + $0xc4] sm:$0xf]
    %v1682 = vld [vmem:[#allocation7 + $0xc8] sm:$0xf]
    %v1683 = vld [vmem:[#allocation7 + $0xcc] sm:$0xf]
    %v1684 = vld [vmem:[#allocation7 + $0xd0] sm:$0xf]
    %v1685 = vld [vmem:[#allocation7 + $0xd4] sm:$0xf]
    %v1686 = vld [vmem:[#allocation7 + $0xd8] sm:$0xf]
    %v1687 = vld [vmem:[#allocation7 + $0xdc] sm:$0xf]
    %v1688 = vld [vmem:[#allocation7 + $0xe0] sm:$0xf]
    %v1689 = vld [vmem:[#allocation7 + $0xe4] sm:$0xf]
    %v1690 = vld [vmem:[#allocation7 + $0xe8] sm:$0xf]
    %v1691 = vld [vmem:[#allocation7 + $0xec] sm:$0xf]
    %v1692 = vld [vmem:[#allocation7 + $0xf0] sm:$0xf]
    %v1693 = vld [vmem:[#allocation7 + $0xf4] sm:$0xf]
    %v1694 = vld [vmem:[#allocation7 + $0xf8] sm:$0xf]
    %v1695 = vld [vmem:[#allocation7 + $0xfc] sm:$0xf]
    %v1696 = vld [vmem:[%s4] sm:$0x1]
    %v1698 = vlaneseq
    %v1699 = vshrl.u32 %v1698, 7
    %v1700 = vsub.s32 0, %v1699
    %v1701 = vrot.slane %v1696, %v1700
    %v1767 = vunpack.c.l.b16 %v1632
    %v1768 = vunpack.c.l.b16 %v1633
    %v1769 = vunpack.c.l.b16 %v1634
    %v1770 = vunpack.c.l.b16 %v1635
    %v1771 = vunpack.c.l.b16 %v1636
    %v1772 = vunpack.c.l.b16 %v1637
    %v1773 = vunpack.c.l.b16 %v1638
    %v1774 = vunpack.c.l.b16 %v1639
    %v1775 = vunpack.c.l.b16 %v1640
    %v1776 = vunpack.c.l.b16 %v1641
    %v1777 = vunpack.c.l.b16 %v1642
    %v1778 = vunpack.c.l.b16 %v1643
    %v1779 = vunpack.c.l.b16 %v1644
    %v1780 = vunpack.c.l.b16 %v1645
    %v1781 = vunpack.c.l.b16 %v1646
    %v1782 = vunpack.c.l.b16 %v1647
    %v1783 = vunpack.c.l.b16 %v1648
    %v1784 = vunpack.c.l.b16 %v1649
    %v1785 = vunpack.c.l.b16 %v1650
    %v1786 = vunpack.c.l.b16 %v1651
    %v1787 = vunpack.c.l.b16 %v1652
    %v1788 = vunpack.c.l.b16 %v1653
    %v1789 = vunpack.c.l.b16 %v1654
    %v1790 = vunpack.c.l.b16 %v1655
    %v1791 = vunpack.c.l.b16 %v1656
    %v1792 = vunpack.c.l.b16 %v1657
    %v1793 = vunpack.c.l.b16 %v1658
    %v1794 = vunpack.c.l.b16 %v1659
    %v1795 = vunpack.c.l.b16 %v1660
    %v1796 = vunpack.c.l.b16 %v1661
    %v1797 = vunpack.c.l.b16 %v1662
    %v1798 = vunpack.c.l.b16 %v1663
    %v1799 = vunpack.c.l.b16 %v1664
    %v1800 = vunpack.c.l.b16 %v1665
    %v1801 = vunpack.c.l.b16 %v1666
    %v1802 = vunpack.c.l.b16 %v1667
    %v1803 = vunpack.c.l.b16 %v1668
    %v1804 = vunpack.c.l.b16 %v1669
    %v1805 = vunpack.c.l.b16 %v1670
    %v1806 = vunpack.c.l.b16 %v1671
    %v1807 = vunpack.c.l.b16 %v1672
    %v1808 = vunpack.c.l.b16 %v1673
    %v1809 = vunpack.c.l.b16 %v1674
    %v1810 = vunpack.c.l.b16 %v1675
    %v1811 = vunpack.c.l.b16 %v1676
    %v1812 = vunpack.c.l.b16 %v1677
    %v1813 = vunpack.c.l.b16 %v1678
    %v1814 = vunpack.c.l.b16 %v1679
    %v1815 = vunpack.c.l.b16 %v1680
    %v1816 = vunpack.c.l.b16 %v1681
    %v1817 = vunpack.c.l.b16 %v1682
    %v1818 = vunpack.c.l.b16 %v1683
    %v1819 = vunpack.c.l.b16 %v1684
    %v1820 = vunpack.c.l.b16 %v1685
    %v1821 = vunpack.c.l.b16 %v1686
    %v1822 = vunpack.c.l.b16 %v1687
    %v1823 = vunpack.c.l.b16 %v1688
    %v1824 = vunpack.c.l.b16 %v1689
    %v1825 = vunpack.c.l.b16 %v1690
    %v1826 = vunpack.c.l.b16 %v1691
    %v1827 = vunpack.c.l.b16 %v1692
    %v1828 = vunpack.c.l.b16 %v1693
    %v1829 = vunpack.c.l.b16 %v1694
    %v1830 = vunpack.c.l.b16 %v1695
    %v1831 = vpack.c.b16 %v1768, %v1767
    %v1832 = vpack.c.b16 %v1770, %v1769
    %v1833 = vpack.c.b16 %v1772, %v1771
    %v1834 = vpack.c.b16 %v1774, %v1773
    %v1835 = vpack.c.b16 %v1776, %v1775
    %v1836 = vpack.c.b16 %v1778, %v1777
    %v1837 = vpack.c.b16 %v1780, %v1779
    %v1838 = vpack.c.b16 %v1782, %v1781
    %v1839 = vpack.c.b16 %v1784, %v1783
    %v1840 = vpack.c.b16 %v1786, %v1785
    %v1841 = vpack.c.b16 %v1788, %v1787
    %v1842 = vpack.c.b16 %v1790, %v1789
    %v1843 = vpack.c.b16 %v1792, %v1791
    %v1844 = vpack.c.b16 %v1794, %v1793
    %v1845 = vpack.c.b16 %v1796, %v1795
    %v1846 = vpack.c.b16 %v1798, %v1797
    %v1847 = vpack.c.b16 %v1800, %v1799
    %v1848 = vpack.c.b16 %v1802, %v1801
    %v1849 = vpack.c.b16 %v1804, %v1803
    %v1850 = vpack.c.b16 %v1806, %v1805
    %v1851 = vpack.c.b16 %v1808, %v1807
    %v1852 = vpack.c.b16 %v1810, %v1809
    %v1853 = vpack.c.b16 %v1812, %v1811
    %v1854 = vpack.c.b16 %v1814, %v1813
    %v1855 = vpack.c.b16 %v1816, %v1815
    %v1856 = vpack.c.b16 %v1818, %v1817
    %v1857 = vpack.c.b16 %v1820, %v1819
    %v1858 = vpack.c.b16 %v1822, %v1821
    %v1859 = vpack.c.b16 %v1824, %v1823
    %v1860 = vpack.c.b16 %v1826, %v1825
    %v1861 = vpack.c.b16 %v1828, %v1827
    %v1862 = vpack.c.b16 %v1830, %v1829
    %1895 = vmatprep.subr.bf16.mxu0 0
    %1896 = vmatpush1.bf16.msra.mxu0 %v1831
    %1897 = vmatprep.subr.bf16.mxu0 0
    %1898 = vmatpush1.bf16.msra.mxu0 %v1832
    %1899 = vmatprep.subr.bf16.mxu0 0
    %1900 = vmatpush1.bf16.msra.mxu0 %v1833
    %1901 = vmatprep.subr.bf16.mxu0 0
    %1902 = vmatpush1.bf16.msra.mxu0 %v1834
    %1903 = vmatprep.subr.bf16.mxu0 0
    %1904 = vmatpush1.bf16.msra.mxu0 %v1835
    %1905 = vmatprep.subr.bf16.mxu0 0
    %1906 = vmatpush1.bf16.msra.mxu0 %v1836
    %1907 = vmatprep.subr.bf16.mxu0 0
    %1908 = vmatpush1.bf16.msra.mxu0 %v1837
    %1909 = vmatprep.subr.bf16.mxu0 0
    %1910 = vmatpush1.bf16.msra.mxu0 %v1838
    %1911 = vmatprep.subr.bf16.mxu0 0
    %1912 = vmatpush1.bf16.msra.mxu0 %v1839
    %1913 = vmatprep.subr.bf16.mxu0 0
    %1914 = vmatpush1.bf16.msra.mxu0 %v1840
    %1915 = vmatprep.subr.bf16.mxu0 0
    %1916 = vmatpush1.bf16.msra.mxu0 %v1841
    %1917 = vmatprep.subr.bf16.mxu0 0
    %1918 = vmatpush1.bf16.msra.mxu0 %v1842
    %1919 = vmatprep.subr.bf16.mxu0 0
    %1920 = vmatpush1.bf16.msra.mxu0 %v1843
    %1921 = vmatprep.subr.bf16.mxu0 0
    %1922 = vmatpush1.bf16.msra.mxu0 %v1844
    %1923 = vmatprep.subr.bf16.mxu0 0
    %1924 = vmatpush1.bf16.msra.mxu0 %v1845
    %1925 = vmatprep.subr.bf16.mxu0 0
    %1926 = vmatpush1.bf16.msra.mxu0 %v1846
    %1927 = vmatprep.mubr.bf16.mxu0 %v1629
    %1928 = vmatmul.mubr.bf16.gmra.mrb[0].mxu0 %v1628
    %v1929 = vpop.f32.mrb[0].mxu0
    %v1930 = vadd.f32 %v1701, %v1929
    %v1931 = vpop.f32.mrb[0].mxu0
    %v1932 = vpop.f32.mrb[0].mxu0
    %v1933 = vpop.f32.mrb[0].mxu0
    %1934 = vdwg.mxu0
    %1935 = vmatprep.subr.bf16.mxu0 0
    %1936 = vmatpush1.bf16.msra.mxu0 %v1847
    %1937 = vmatprep.subr.bf16.mxu0 0
    %1938 = vmatpush1.bf16.msra.mxu0 %v1848
    %1939 = vmatprep.subr.bf16.mxu0 0
    %1940 = vmatpush1.bf16.msra.mxu0 %v1849
    %1941 = vmatprep.subr.bf16.mxu0 0
    %1942 = vmatpush1.bf16.msra.mxu0 %v1850
    %1943 = vmatprep.subr.bf16.mxu0 0
    %1944 = vmatpush1.bf16.msra.mxu0 %v1851
    %1945 = vmatprep.subr.bf16.mxu0 0
    %1946 = vmatpush1.bf16.msra.mxu0 %v1852
    %1947 = vmatprep.subr.bf16.mxu0 0
    %1948 = vmatpush1.bf16.msra.mxu0 %v1853
    %1949 = vmatprep.subr.bf16.mxu0 0
    %1950 = vmatpush1.bf16.msra.mxu0 %v1854
    %1951 = vmatprep.subr.bf16.mxu0 0
    %1952 = vmatpush1.bf16.msra.mxu0 %v1855
    %1953 = vmatprep.subr.bf16.mxu0 0
    %1954 = vmatpush1.bf16.msra.mxu0 %v1856
    %1955 = vmatprep.subr.bf16.mxu0 0
    %1956 = vmatpush1.bf16.msra.mxu0 %v1857
    %1957 = vmatprep.subr.bf16.mxu0 0
    %1958 = vmatpush1.bf16.msra.mxu0 %v1858
    %1959 = vmatprep.subr.bf16.mxu0 0
    %1960 = vmatpush1.bf16.msra.mxu0 %v1859
    %1961 = vmatprep.subr.bf16.mxu0 0
    %1962 = vmatpush1.bf16.msra.mxu0 %v1860
    %1963 = vmatprep.subr.bf16.mxu0 0
    %1964 = vmatpush1.bf16.msra.mxu0 %v1861
    %1965 = vmatprep.subr.bf16.mxu0 0
    %1966 = vmatpush1.bf16.msra.mxu0 %v1862
    %1967 = vmatprep.mubr.bf16.mxu0 %v1631
    %1968 = vmatmul.mubr.bf16.gmra.mrb[0].mxu0 %v1630
    %v1969 = vpop.f32.mrb[0].mxu0
    %v1970 = vadd.f32 %v1930, %v1969
    %v1971 = vpop.f32.mrb[0].mxu0
    %v1972 = vpop.f32.mrb[0].mxu0
    %v1973 = vpop.f32.mrb[0].mxu0
    %1974 = vdwg.mxu0
    %1975 = vrot.lane.b32.xlu0 %v1970, 64
    %v1976 = vpop.permute.xlu0 %1975
    %v1977 = vmul.f32 %v1976, 1.442695
    %v1978 = vpow.pop %v1977
    %v1979 = vld [vmem:[%s5] sm:$0xf]
    %v1980 = vunpack.c.l.bf16 %v1979
    %v1981 = vmul.f32 %v1978, %v1980
    %v1982 = vadd.f32 %v1970, %v1981
    %vm1983 = vcmask 15360
    %1984 = vst.msk [vmem:[%s6] sm:$0xff] %vm1983, %v1982
    %v1985 = vlaneseq
    %v1986 = vshrl.u32 %v1985, 7
    %s1987 = smul.u32 0, 8
    %v1988 = vstv %s1987
    %v1989 = vadd.s32 %v1986, %v1988
    %vm1990 = vcmp.lt.s32.totalorder %v1989, 8
    %v1991 = vmul.f32 %v1978, %v1978
    %v1992 = vmul.f32 %v1970, %v1970
    %v1993 = vadd.f32 %v1991, %v1992
    %v1994 = vsub.f32 %v1993, %v1976
    %v1995 = vsub.f32 %v1994, 0.5
    %v1996 = vsel %vm1990, %v1995, 0.0
    %v1997 = vsel %vm1983, %v1996, 0.0
    %v1998 = vrot.slane %v1997, 4
    %v1999 = vadd.f32 %v1997, %v1998
    %v2000 = vrot.slane %v1999, 2
    %v2001 = vadd.f32 %v1999, %v2000
    %v2002 = vrot.slane %v2001, 1
    %v2003 = vadd.f32 %v2001, %v2002
    %vm2004 = vcmask 8192
    %2005 = vst.msk [vmem:[#allocation8] sm:$0x1] %vm2004, %v2003
    // Predicated region
    $region38: #{tpu_custom_call.1} parent=1 // pred_check
      _
    $region39: #{tpu_custom_call.1} parent=1 // pred_check_branch
      %2007 = sbr.rel (0) target = $region41
    $region40: #{tpu_custom_call.1} parent=1 // pred_region
      _
    $region41: #{tpu_custom_call.1} parent=1 // pred_fallthru
      _
    // Predicated region
    $region42: #{tpu_custom_call.1} parent=1 // pred_check
      _
    $region43: #{tpu_custom_call.1} parent=1 // pred_check_branch
      %2009 = sbr.rel (0) target = $region45
    $region44: #{tpu_custom_call.1} parent=1 // pred_region
      %s2011 = ssub.s32 16, 16
      %2012 = vsyncadd [#allocation4], %s2011
      %s2014 = sshll.u32 [#allocation8], 4
      %s2015 = int_to_ptr.vmem [resolvable:$true] %s2014
      %2017 = dma.vmem_to_hbm [thread:$0]  %s2015, 16, %s7, [#allocation4]
    $region45: #{tpu_custom_call.1} parent=1 // pred_fallthru
      _
    // Predicated region
    $region46: #{tpu_custom_call.1} parent=1 // pred_check
      _
    $region47: #{tpu_custom_call.1} parent=1 // pred_check_branch
      %2019 = sbr.rel (0) target = $region49
    $region48: #{tpu_custom_call.1} parent=1 // pred_region
      _
    $region49: #{tpu_custom_call.1} parent=1 // pred_fallthru
      _
    // Predicated region
    $region50: #{tpu_custom_call.1} parent=1 // pred_check
      _
    $region51: #{tpu_custom_call.1} parent=1 // pred_check_branch
      %2021 = sbr.rel (0) target = $region53
    $region52: #{tpu_custom_call.1} parent=1 // pred_region
      %2022 = dma.done [#allocation4], 16
    $region53: #{tpu_custom_call.1} parent=1 // pred_fallthru
      _
    %2023 = vsyncpa [#allocation3], 1
    %2024 = vsyncpa [#allocation6], 1
    %2025 = vsyncpa [#allocation4], 1

</llo_original>
